<compile_context>
chip_gen: v7x
topology: tpu7x:2x2x1
jax: 0.10.0
libtpu: 0.0.40
codegen_flags: <defaults>
</compile_context>

<pallas_src>
import math

import jax
import jax.numpy as jnp
from jax.experimental import pallas as pl
from jax.experimental.pallas import tpu as pltpu


# ------------------------------------------------------------------------------ XLA glue
def knn(a, b, k):
    """a:(B,C,N), b:(B,C,M) channels-first -> idx:(B,N,k). Distances kept in f32."""
    inner = jnp.einsum("bcn,bcm->bnm", a, b)                 # (B,N,M)
    aa = jnp.sum(a * a, axis=1)                              # (B,N)
    bb = jnp.sum(b * b, axis=1)                              # (B,M)
    neg_dist = 2.0 * inner - aa[:, :, None] - bb[:, None, :]
    _, idx = jax.lax.top_k(neg_dist, k)                      # (B,N,k)
    return idx


def gather_neighbors(points, idx):
    """points:(B,C,N), idx:(B,N,K) -> neighbors:(B,K,C,N), out[b,k,c,n]=points[b,c,idx[b,n,k]].

    Raw neighbors only: the (n_k - center) subtract is folded into the kernel algebra, so the
    K-replicated diff tensor is never written to HBM.
    """
    idx_t = jnp.transpose(idx, (0, 2, 1))                    # (B,K,N) tiny int32
    def per_batch(p, it):                                    # p:(C,N), it:(K,N)
        return jax.vmap(lambda row: jnp.take(p, row, axis=1))(it)   # (K,C,N)
    return jax.vmap(per_batch)(points, idx_t)                # (B,K,C,N)


# ---------------------------------------------------------------------- Pallas fused kernel
def _edge_conv_kernel(n_ref, c_ref, wd_ref, wc_ref, b_ref, o_ref):
    """n:(K,Cin,TN) bf16 neighbors, c:(Cin,TN) bf16 center,
    wd/wc:(Cout,Cin) bf16 scale-folded weights (wc = (Wc - Wd)*s), b:(Cout,1) f32 folded bias
    -> o:(Cout,TN) f32.  N is the lane dim throughout (lane-dense loads/stores)."""
    K = n_ref.shape[0]
    wd = wd_ref[...]

    # TODO(synk): block 1 has Cin=3 (contraction depth 3 -> low MXU util); fine while DMA-bound,
    #             a VPU 3-FMA formulation or Cin pad 3->8 is the next micro-opt.
    m = jnp.dot(wd, n_ref[0], preferred_element_type=jnp.float32)          # (Cout,TN) f32
    for k in range(1, K):                                                   # running max: VPU
        m = jnp.maximum(m, jnp.dot(wd, n_ref[k], preferred_element_type=jnp.float32))

    # Center contribution: once per tile (not K times), with the diff algebra folded in.
    yc = jnp.dot(wc_ref[...], c_ref[...], preferred_element_type=jnp.float32)

    z = m + yc + b_ref[...]                                                 # bias bcast on lanes
    o_ref[...] = jnp.where(z >= 0, z, 0.2 * z).astype(o_ref.dtype)          # LeakyReLU once


def _pick_tile_n(n, k, cin, cout, vmem_budget=20 * 1024 * 1024):
    """Largest lane-dense tile (multiple of 128) dividing N whose double-buffered working set
    fits the VMEM budget (conservative for v7x 64 MiB physical / 16-32 MiB scoped defaults)."""
    cin_p = ((cin + 7) // 8) * 8
    cout_p = ((cout + 7) // 8) * 8
    for t in (1024, 512, 256, 128):
        if n % t != 0:
            continue
        live = 2 * (k * cin_p * t * 2)      # 2x-buffered bf16 neighbors
        live += 2 * (cin_p * t * 2)         # 2x-buffered bf16 center
        live += 2 * (cout_p * t * 4)        # 2x-buffered f32 output
        if live <= vmem_budget:
            return t
    # TODO(synk): N < 128 or not a multiple of 128 -> single full-N block per grid step.
    return n


def edge_conv_bn_lrelu_max(neighbors, center, w_diff, w_center, bias):
    """Fused 1x1-conv (BN-scale folded) + bias + LeakyReLU(0.2) + max over K, channels-first.

    neighbors: (B, K, Cin, N)   raw gathered neighbors (no diff materialized)
    center:    (B, Cin, N)
    w_diff:    (Cout, Cin) = W[:, :Cin] * s
    w_center:  (Cout, Cin) = (W[:, Cin:] - W[:, :Cin]) * s
    bias:      (Cout, 1)   = folded BN bias (f32)
    returns    (B, Cout, N) f32
    """
    B, K, Cin, N = neighbors.shape
    Cout = w_diff.shape[0]
    tn = _pick_tile_n(N, K, Cin, Cout)

    neighbors = neighbors.astype(jnp.bfloat16)
    center = center.astype(jnp.bfloat16)
    w_diff = w_diff.astype(jnp.bfloat16)
    w_center = w_center.astype(jnp.bfloat16)
    bias = bias.astype(jnp.float32)

    return pl.pallas_call(
        _edge_conv_kernel,
        out_shape=jax.ShapeDtypeStruct((B, Cout, N), jnp.float32),
        grid=(B, N // tn),
        in_specs=[
            pl.BlockSpec((None, K, Cin, tn), lambda b, n: (b, 0, 0, n)),
            pl.BlockSpec((None, Cin, tn), lambda b, n: (b, 0, n)),
            pl.BlockSpec((Cout, Cin), lambda b, n: (0, 0)),
            pl.BlockSpec((Cout, Cin), lambda b, n: (0, 0)),
            pl.BlockSpec((Cout, 1), lambda b, n: (0, 0)),
        ],
        out_specs=pl.BlockSpec((None, Cout, tn), lambda b, n: (b, 0, n)),
        compiler_params=pltpu.CompilerParams(
            dimension_semantics=("parallel", "parallel"),
            vmem_limit_bytes=32 * 1024 * 1024),
    )(neighbors, center, w_diff, w_center, bias)


# ---------------------------------------------------------------------------- full forward
def point_embedding_forward(params, a, b, embedding_k):
    """a:(B,C,N), b:(B,C,M) channels-first -> (B, conv2_channel_out, N) channels-first."""
    # block 1: edge conv between a and b (gather from a, as in the reference code)
    idx = knn(a, b, embedding_k)
    a_bf = a.astype(jnp.bfloat16)
    neigh = gather_neighbors(a_bf, idx)                                   # (B,K,C,N) bf16
    x1 = edge_conv_bn_lrelu_max(neigh, a_bf,
                                params["wd1"], params["wc1"], params["b1"])   # (B,C1,N) f32

    # block 2: edge conv of the features with themselves
    idx = knn(x1, x1, embedding_k)                                        # f32 distances
    x1_bf = x1.astype(jnp.bfloat16)
    neigh = gather_neighbors(x1_bf, idx)                                  # (B,K,C1,N) bf16
    x2 = edge_conv_bn_lrelu_max(neigh, x1_bf,
                                params["wd2"], params["wc2"], params["b2"])   # (B,C2,N) f32
    return x2                                                             # channels-first already


# ------------------------------------------------------------------------ pure-JAX references
def _ref_edge_conv_fused(neighbors, center, w_diff, w_center, bias):
    """Mirror of the kernel math in plain JAX (same operands/dtypes the kernel sees)."""
    f32 = jnp.float32
    yd = jnp.einsum("oc,bkcn->bkon", w_diff.astype(f32), neighbors.astype(f32))
    ymax = jnp.max(yd, axis=1)                                            # (B,Cout,N)
    yc = jnp.einsum("oc,bcn->bon", w_center.astype(f32), center.astype(f32))
    z = ymax + yc + bias.astype(f32)[None]
    return jnp.where(z >= 0, z, 0.2 * z)


def _ref_edge_conv_unfused(neighbors, center, W, s, b):
    """Un-refactored reference: concat(diff, center) @ W, BN affine, LReLU, max over K."""
    diff = neighbors - center[:, None]
    cen = jnp.broadcast_to(center[:, None], neighbors.shape)
    feat = jnp.concatenate([diff, cen], axis=2)                           # (B,K,2C,N)
    y = jnp.einsum("oc,bkcn->bkon", W, feat)
    y = y * s[None, None, :, None] + b[None, None, :, None]
    y = jnp.where(y >= 0, y, 0.2 * y)
    return jnp.max(y, axis=1)                                             # (B,Cout,N)


def _fold_bn(gamma, beta, mean, var, eps=1e-5):
    scale = gamma / jnp.sqrt(var + eps)
    bias = beta - mean * scale
    return scale, bias


# --------------------------------------------------------------------------------------- main
if __name__ == "__main__":
    B, C, N, M = 2, 3, 64, 64
    embedding_k = 8
    conv1_channel_in, conv1_channel_out = 2 * C, 32
    conv2_channel_in, conv2_channel_out = 2 * conv1_channel_out, 32

    key = jax.random.PRNGKey(0)
    ks = jax.random.split(key, 12)

    a = jax.random.normal(ks[0], (B, C, N), jnp.float32)
    b = jax.random.normal(ks[1], (B, C, M), jnp.float32)

    # conv weights (PyTorch (Cout, 2*Cin, 1, 1) stored as (Cout, 2*Cin))
    W1 = jax.random.normal(ks[2], (conv1_channel_out, conv1_channel_in), jnp.float32) \
        * (1.0 / math.sqrt(conv1_channel_in))
    W2 = jax.random.normal(ks[3], (conv2_channel_out, conv2_channel_in), jnp.float32) \
        * (1.0 / math.sqrt(conv2_channel_in))

    # deterministic BatchNorm parameters / running stats (eval mode), folded to affine
    g1 = 1.0 + 0.1 * jax.random.normal(ks[4], (conv1_channel_out,), jnp.float32)
    be1 = 0.1 * jax.random.normal(ks[5], (conv1_channel_out,), jnp.float32)
    m1 = 0.05 * jax.random.normal(ks[6], (conv1_channel_out,), jnp.float32)
    v1 = 0.5 + jnp.abs(jax.random.normal(ks[7], (conv1_channel_out,), jnp.float32))
    g2 = 1.0 + 0.1 * jax.random.normal(ks[8], (conv2_channel_out,), jnp.float32)
    be2 = 0.1 * jax.random.normal(ks[9], (conv2_channel_out,), jnp.float32)
    m2 = 0.05 * jax.random.normal(ks[10], (conv2_channel_out,), jnp.float32)
    v2 = 0.5 + jnp.abs(jax.random.normal(ks[11], (conv2_channel_out,), jnp.float32))

    s1, bb1 = _fold_bn(g1, be1, m1, v1)
    s2, bb2 = _fold_bn(g2, be2, m2, v2)

    # fold BN scale into the split weights; fold the diff algebra into the center weight
    wd1_f = W1[:, :C] * s1[:, None]
    wc1_f = (W1[:, C:] - W1[:, :C]) * s1[:, None]
    wd2_f = W2[:, :conv1_channel_out] * s2[:, None]
    wc2_f = (W2[:, conv1_channel_out:] - W2[:, :conv1_channel_out]) * s2[:, None]

    params = {
        "wd1": wd1_f.astype(jnp.bfloat16), "wc1": wc1_f.astype(jnp.bfloat16),
        "b1": bb1.reshape(-1, 1),
        "wd2": wd2_f.astype(jnp.bfloat16), "wc2": wc2_f.astype(jnp.bfloat16),
        "b2": bb2.reshape(-1, 1),
    }

    # --- run the fused forward (jitted end-to-end) ---
    fwd = jax.jit(lambda p, x, y: point_embedding_forward(p, x, y, embedding_k))
    out = jax.block_until_ready(fwd(params, a, b))
    assert out.shape == (B, conv2_channel_out, N), out.shape

    # --- check 1: fold algebra is exact (pure JAX, f32, shared idx) ---
    idx1 = knn(a, b, embedding_k)
    neigh1_f32 = gather_neighbors(a, idx1)                                # (B,K,C,N) f32
    alg_fused = _ref_edge_conv_fused(neigh1_f32, a, wd1_f, wc1_f, bb1.reshape(-1, 1))
    alg_unfused = _ref_edge_conv_unfused(neigh1_f32, a, W1, s1, bb1)
    assert jnp.allclose(alg_fused, alg_unfused, rtol=1e-4, atol=1e-4), \
        float(jnp.max(jnp.abs(alg_fused - alg_unfused)))

    # --- check 2: Pallas kernel vs plain-JAX mirror on identical bf16 operands (shared idx) ---
    a_bf = a.astype(jnp.bfloat16)
    neigh1 = gather_neighbors(a_bf, idx1)
    x1_k = edge_conv_bn_lrelu_max(neigh1, a_bf, params["wd1"], params["wc1"], params["b1"])
    x1_r = _ref_edge_conv_fused(neigh1, a_bf, params["wd1"], params["wc1"], params["b1"])
    assert jnp.allclose(x1_k, x1_r, rtol=1e-2, atol=1e-2), float(jnp.max(jnp.abs(x1_k - x1_r)))

    idx2 = knn(x1_k, x1_k, embedding_k)
    x1_bf = x1_k.astype(jnp.bfloat16)
    neigh2 = gather_neighbors(x1_bf, idx2)
    x2_k = edge_conv_bn_lrelu_max(neigh2, x1_bf, params["wd2"], params["wc2"], params["b2"])
    x2_r = _ref_edge_conv_fused(neigh2, x1_bf, params["wd2"], params["wc2"], params["b2"])
    assert jnp.allclose(x2_k, x2_r, rtol=1e-2, atol=1e-2), float(jnp.max(jnp.abs(x2_k - x2_r)))

    print("KERNEL_OK")
</pallas_src>

<mosaic_0001>
module attributes {stable_mosaic.version = 11 : i64} {
  func.func @_edge_conv_kernel(%arg0: i32, %arg1: i32, %arg2: memref<1x8x3x64xbf16, #tpu.memory_space<vmem>>, %arg3: memref<1x3x64xbf16, #tpu.memory_space<vmem>>, %arg4: memref<32x3xbf16, #tpu.memory_space<vmem>>, %arg5: memref<32x3xbf16, #tpu.memory_space<vmem>>, %arg6: memref<32x1xf32, #tpu.memory_space<vmem>>, %arg7: memref<1x32x64xf32, #tpu.memory_space<vmem>>) attributes {dimension_semantics = [#tpu.dimension_semantics<parallel>, #tpu.dimension_semantics<parallel>], iteration_bounds = array<i64: 2, 1>, scalar_prefetch = 0 : i64, scratch_operands = 0 : i64, tpu.core_type = #tpu.core_type<tc>, window_params = [{transform_indices = @transform_0, window_bounds = array<i64: 1, 8, 3, 64>}, {transform_indices = @transform_1, window_bounds = array<i64: 1, 3, 64>}, {pipeline_mode = #tpu.pipeline_mode<synchronous>, transform_indices = @transform_2, window_bounds = array<i64: 32, 3>}, {pipeline_mode = #tpu.pipeline_mode<synchronous>, transform_indices = @transform_3, window_bounds = array<i64: 32, 3>}, {pipeline_mode = #tpu.pipeline_mode<synchronous>, transform_indices = @transform_4, window_bounds = array<i64: 32, 1>}, {transform_indices = @transform_5, window_bounds = array<i64: 1, 32, 64>}]} {
    %c0 = arith.constant 0 : index
    %c0_0 = arith.constant 0 : index
    %0 = vector.load %arg4[%c0, %c0_0] : memref<32x3xbf16, #tpu.memory_space<vmem>>, vector<32x3xbf16>
    %c0_1 = arith.constant 0 : index
    %c0_2 = arith.constant 0 : index
    %c0_3 = arith.constant 0 : index
    %c0_4 = arith.constant 0 : index
    %1 = vector.load %arg2[%c0_1, %c0_2, %c0_3, %c0_4] : memref<1x8x3x64xbf16, #tpu.memory_space<vmem>>, vector<1x1x3x64xbf16>
    %2 = vector.shape_cast %1 : vector<1x1x3x64xbf16> to vector<3x64xbf16>
    %cst = arith.constant dense<0.000000e+00> : vector<32x64xf32>
    %3 = tpu.matmul %0, %2, %cst {dimension_numbers = #tpu.dot_dimension_numbers<[1], [0], [0], [1], [0, 0, 1, 1], [], []>} : vector<32x3xbf16>, vector<3x64xbf16>, vector<32x64xf32> -> vector<32x64xf32>
    %c0_5 = arith.constant 0 : index
    %c1 = arith.constant 1 : index
    %c0_6 = arith.constant 0 : index
    %c0_7 = arith.constant 0 : index
    %4 = vector.load %arg2[%c0_5, %c1, %c0_6, %c0_7] : memref<1x8x3x64xbf16, #tpu.memory_space<vmem>>, vector<1x1x3x64xbf16>
    %5 = vector.shape_cast %4 : vector<1x1x3x64xbf16> to vector<3x64xbf16>
    %cst_8 = arith.constant dense<0.000000e+00> : vector<32x64xf32>
    %6 = tpu.matmul %0, %5, %cst_8 {dimension_numbers = #tpu.dot_dimension_numbers<[1], [0], [0], [1], [0, 0, 1, 1], [], []>} : vector<32x3xbf16>, vector<3x64xbf16>, vector<32x64xf32> -> vector<32x64xf32>
    %7 = arith.maximumf %3, %6 : vector<32x64xf32>
    %c0_9 = arith.constant 0 : index
    %c2 = arith.constant 2 : index
    %c0_10 = arith.constant 0 : index
    %c0_11 = arith.constant 0 : index
    %8 = vector.load %arg2[%c0_9, %c2, %c0_10, %c0_11] : memref<1x8x3x64xbf16, #tpu.memory_space<vmem>>, vector<1x1x3x64xbf16>
    %9 = vector.shape_cast %8 : vector<1x1x3x64xbf16> to vector<3x64xbf16>
    %cst_12 = arith.constant dense<0.000000e+00> : vector<32x64xf32>
    %10 = tpu.matmul %0, %9, %cst_12 {dimension_numbers = #tpu.dot_dimension_numbers<[1], [0], [0], [1], [0, 0, 1, 1], [], []>} : vector<32x3xbf16>, vector<3x64xbf16>, vector<32x64xf32> -> vector<32x64xf32>
    %11 = arith.maximumf %7, %10 : vector<32x64xf32>
    %c0_13 = arith.constant 0 : index
    %c3 = arith.constant 3 : index
    %c0_14 = arith.constant 0 : index
    %c0_15 = arith.constant 0 : index
    %12 = vector.load %arg2[%c0_13, %c3, %c0_14, %c0_15] : memref<1x8x3x64xbf16, #tpu.memory_space<vmem>>, vector<1x1x3x64xbf16>
    %13 = vector.shape_cast %12 : vector<1x1x3x64xbf16> to vector<3x64xbf16>
    %cst_16 = arith.constant dense<0.000000e+00> : vector<32x64xf32>
    %14 = tpu.matmul %0, %13, %cst_16 {dimension_numbers = #tpu.dot_dimension_numbers<[1], [0], [0], [1], [0, 0, 1, 1], [], []>} : vector<32x3xbf16>, vector<3x64xbf16>, vector<32x64xf32> -> vector<32x64xf32>
    %15 = arith.maximumf %11, %14 : vector<32x64xf32>
    %c0_17 = arith.constant 0 : index
    %c4 = arith.constant 4 : index
    %c0_18 = arith.constant 0 : index
    %c0_19 = arith.constant 0 : index
    %16 = vector.load %arg2[%c0_17, %c4, %c0_18, %c0_19] : memref<1x8x3x64xbf16, #tpu.memory_space<vmem>>, vector<1x1x3x64xbf16>
    %17 = vector.shape_cast %16 : vector<1x1x3x64xbf16> to vector<3x64xbf16>
    %cst_20 = arith.constant dense<0.000000e+00> : vector<32x64xf32>
    %18 = tpu.matmul %0, %17, %cst_20 {dimension_numbers = #tpu.dot_dimension_numbers<[1], [0], [0], [1], [0, 0, 1, 1], [], []>} : vector<32x3xbf16>, vector<3x64xbf16>, vector<32x64xf32> -> vector<32x64xf32>
    %19 = arith.maximumf %15, %18 : vector<32x64xf32>
    %c0_21 = arith.constant 0 : index
    %c5 = arith.constant 5 : index
    %c0_22 = arith.constant 0 : index
    %c0_23 = arith.constant 0 : index
    %20 = vector.load %arg2[%c0_21, %c5, %c0_22, %c0_23] : memref<1x8x3x64xbf16, #tpu.memory_space<vmem>>, vector<1x1x3x64xbf16>
    %21 = vector.shape_cast %20 : vector<1x1x3x64xbf16> to vector<3x64xbf16>
    %cst_24 = arith.constant dense<0.000000e+00> : vector<32x64xf32>
    %22 = tpu.matmul %0, %21, %cst_24 {dimension_numbers = #tpu.dot_dimension_numbers<[1], [0], [0], [1], [0, 0, 1, 1], [], []>} : vector<32x3xbf16>, vector<3x64xbf16>, vector<32x64xf32> -> vector<32x64xf32>
    %23 = arith.maximumf %19, %22 : vector<32x64xf32>
    %c0_25 = arith.constant 0 : index
    %c6 = arith.constant 6 : index
    %c0_26 = arith.constant 0 : index
    %c0_27 = arith.constant 0 : index
    %24 = vector.load %arg2[%c0_25, %c6, %c0_26, %c0_27] : memref<1x8x3x64xbf16, #tpu.memory_space<vmem>>, vector<1x1x3x64xbf16>
    %25 = vector.shape_cast %24 : vector<1x1x3x64xbf16> to vector<3x64xbf16>
    %cst_28 = arith.constant dense<0.000000e+00> : vector<32x64xf32>
    %26 = tpu.matmul %0, %25, %cst_28 {dimension_numbers = #tpu.dot_dimension_numbers<[1], [0], [0], [1], [0, 0, 1, 1], [], []>} : vector<32x3xbf16>, vector<3x64xbf16>, vector<32x64xf32> -> vector<32x64xf32>
    %27 = arith.maximumf %23, %26 : vector<32x64xf32>
    %c0_29 = arith.constant 0 : index
    %c7 = arith.constant 7 : index
    %c0_30 = arith.constant 0 : index
    %c0_31 = arith.constant 0 : index
    %28 = vector.load %arg2[%c0_29, %c7, %c0_30, %c0_31] : memref<1x8x3x64xbf16, #tpu.memory_space<vmem>>, vector<1x1x3x64xbf16>
    %29 = vector.shape_cast %28 : vector<1x1x3x64xbf16> to vector<3x64xbf16>
    %cst_32 = arith.constant dense<0.000000e+00> : vector<32x64xf32>
    %30 = tpu.matmul %0, %29, %cst_32 {dimension_numbers = #tpu.dot_dimension_numbers<[1], [0], [0], [1], [0, 0, 1, 1], [], []>} : vector<32x3xbf16>, vector<3x64xbf16>, vector<32x64xf32> -> vector<32x64xf32>
    %31 = arith.maximumf %27, %30 : vector<32x64xf32>
    %c0_33 = arith.constant 0 : index
    %c0_34 = arith.constant 0 : index
    %32 = vector.load %arg5[%c0_33, %c0_34] : memref<32x3xbf16, #tpu.memory_space<vmem>>, vector<32x3xbf16>
    %c0_35 = arith.constant 0 : index
    %c0_36 = arith.constant 0 : index
    %c0_37 = arith.constant 0 : index
    %33 = vector.load %arg3[%c0_35, %c0_36, %c0_37] : memref<1x3x64xbf16, #tpu.memory_space<vmem>>, vector<1x3x64xbf16>
    %34 = vector.shape_cast %33 : vector<1x3x64xbf16> to vector<3x64xbf16>
    %cst_38 = arith.constant dense<0.000000e+00> : vector<32x64xf32>
    %35 = tpu.matmul %32, %34, %cst_38 {dimension_numbers = #tpu.dot_dimension_numbers<[1], [0], [0], [1], [0, 0, 1, 1], [], []>} : vector<32x3xbf16>, vector<3x64xbf16>, vector<32x64xf32> -> vector<32x64xf32>
    %36 = arith.addf %31, %35 : vector<32x64xf32>
    %c0_39 = arith.constant 0 : index
    %c0_40 = arith.constant 0 : index
    %37 = vector.load %arg6[%c0_39, %c0_40] : memref<32x1xf32, #tpu.memory_space<vmem>>, vector<32x1xf32>
    %38 = vector.broadcast %37 : vector<32x1xf32> to vector<32x64xf32>
    %39 = arith.addf %36, %38 : vector<32x64xf32>
    %cst_41 = arith.constant 0.000000e+00 : f32
    %40 = vector.broadcast %cst_41 : f32 to vector<32x64xf32>
    %41 = arith.cmpf oge, %39, %40 : vector<32x64xf32>
    %cst_42 = arith.constant 2.000000e-01 : f32
    %42 = vector.broadcast %cst_42 : f32 to vector<32x64xf32>
    %43 = arith.mulf %42, %39 : vector<32x64xf32>
    %44 = arith.select %41, %39, %43 : vector<32x64xi1>, vector<32x64xf32>
    %c0_43 = arith.constant 0 : index
    %c0_44 = arith.constant 0 : index
    %c0_45 = arith.constant 0 : index
    %45 = vector.load %arg7[%c0_43, %c0_44, %c0_45] : memref<1x32x64xf32, #tpu.memory_space<vmem>>, vector<1x32x64xf32>
    %46 = vector.shape_cast %45 : vector<1x32x64xf32> to vector<32x64xf32>
    %47 = vector.shape_cast %44 : vector<32x64xf32> to vector<1x32x64xf32>
    tpu.vector_store %arg7[%c0_43, %c0_44, %c0_45], %47 {strides = array<i32>} : memref<1x32x64xf32, #tpu.memory_space<vmem>>, vector<1x32x64xf32>,
    return
  }
  func.func @transform_0(%arg0: i32, %arg1: i32) -> (i32, i32, i32, i32) {
    %c0_i32 = arith.constant 0 : i32
    %c0_i32_0 = arith.constant 0 : i32
    %c0_i32_1 = arith.constant 0 : i32
    return %arg0, %c0_i32, %c0_i32_0, %arg1 : i32, i32, i32, i32
  }
  func.func @transform_1(%arg0: i32, %arg1: i32) -> (i32, i32, i32) {
    %c0_i32 = arith.constant 0 : i32
    %c0_i32_0 = arith.constant 0 : i32
    return %arg0, %c0_i32, %arg1 : i32, i32, i32
  }
  func.func @transform_2(%arg0: i32, %arg1: i32) -> (i32, i32) {
    %c0_i32 = arith.constant 0 : i32
    %c0_i32_0 = arith.constant 0 : i32
    %c0_i32_1 = arith.constant 0 : i32
    return %c0_i32, %c0_i32_0 : i32, i32
  }
  func.func @transform_3(%arg0: i32, %arg1: i32) -> (i32, i32) {
    %c0_i32 = arith.constant 0 : i32
    %c0_i32_0 = arith.constant 0 : i32
    %c0_i32_1 = arith.constant 0 : i32
    return %c0_i32, %c0_i32_0 : i32, i32
  }
  func.func @transform_4(%arg0: i32, %arg1: i32) -> (i32, i32) {
    %c0_i32 = arith.constant 0 : i32
    %c0_i32_0 = arith.constant 0 : i32
    %c0_i32_1 = arith.constant 0 : i32
    return %c0_i32, %c0_i32_0 : i32, i32
  }
  func.func @transform_5(%arg0: i32, %arg1: i32) -> (i32, i32, i32) {
    %c0_i32 = arith.constant 0 : i32
    %c0_i32_0 = arith.constant 0 : i32
    return %arg0, %c0_i32, %arg1 : i32, i32, i32
  }
}

module attributes {stable_mosaic.version = 11 : i64} {
  func.func @_edge_conv_kernel(%arg0: i32, %arg1: i32, %arg2: memref<1x8x32x64xbf16, #tpu.memory_space<vmem>>, %arg3: memref<1x32x64xbf16, #tpu.memory_space<vmem>>, %arg4: memref<32x32xbf16, #tpu.memory_space<vmem>>, %arg5: memref<32x32xbf16, #tpu.memory_space<vmem>>, %arg6: memref<32x1xf32, #tpu.memory_space<vmem>>, %arg7: memref<1x32x64xf32, #tpu.memory_space<vmem>>) attributes {dimension_semantics = [#tpu.dimension_semantics<parallel>, #tpu.dimension_semantics<parallel>], iteration_bounds = array<i64: 2, 1>, scalar_prefetch = 0 : i64, scratch_operands = 0 : i64, tpu.core_type = #tpu.core_type<tc>, window_params = [{transform_indices = @transform_0, window_bounds = array<i64: 1, 8, 32, 64>}, {transform_indices = @transform_1, window_bounds = array<i64: 1, 32, 64>}, {pipeline_mode = #tpu.pipeline_mode<synchronous>, transform_indices = @transform_2, window_bounds = array<i64: 32, 32>}, {pipeline_mode = #tpu.pipeline_mode<synchronous>, transform_indices = @transform_3, window_bounds = array<i64: 32, 32>}, {pipeline_mode = #tpu.pipeline_mode<synchronous>, transform_indices = @transform_4, window_bounds = array<i64: 32, 1>}, {transform_indices = @transform_5, window_bounds = array<i64: 1, 32, 64>}]} {
    %c0 = arith.constant 0 : index
    %c0_0 = arith.constant 0 : index
    %0 = vector.load %arg4[%c0, %c0_0] : memref<32x32xbf16, #tpu.memory_space<vmem>>, vector<32x32xbf16>
    %c0_1 = arith.constant 0 : index
    %c0_2 = arith.constant 0 : index
    %c0_3 = arith.constant 0 : index
    %c0_4 = arith.constant 0 : index
    %1 = vector.load %arg2[%c0_1, %c0_2, %c0_3, %c0_4] : memref<1x8x32x64xbf16, #tpu.memory_space<vmem>>, vector<1x1x32x64xbf16>
    %2 = vector.shape_cast %1 : vector<1x1x32x64xbf16> to vector<32x64xbf16>
    %cst = arith.constant dense<0.000000e+00> : vector<32x64xf32>
    %3 = tpu.matmul %0, %2, %cst {dimension_numbers = #tpu.dot_dimension_numbers<[1], [0], [0], [1], [0, 0, 1, 1], [], []>} : vector<32x32xbf16>, vector<32x64xbf16>, vector<32x64xf32> -> vector<32x64xf32>
    %c0_5 = arith.constant 0 : index
    %c1 = arith.constant 1 : index
    %c0_6 = arith.constant 0 : index
    %c0_7 = arith.constant 0 : index
    %4 = vector.load %arg2[%c0_5, %c1, %c0_6, %c0_7] : memref<1x8x32x64xbf16, #tpu.memory_space<vmem>>, vector<1x1x32x64xbf16>
    %5 = vector.shape_cast %4 : vector<1x1x32x64xbf16> to vector<32x64xbf16>
    %cst_8 = arith.constant dense<0.000000e+00> : vector<32x64xf32>
    %6 = tpu.matmul %0, %5, %cst_8 {dimension_numbers = #tpu.dot_dimension_numbers<[1], [0], [0], [1], [0, 0, 1, 1], [], []>} : vector<32x32xbf16>, vector<32x64xbf16>, vector<32x64xf32> -> vector<32x64xf32>
    %7 = arith.maximumf %3, %6 : vector<32x64xf32>
    %c0_9 = arith.constant 0 : index
    %c2 = arith.constant 2 : index
    %c0_10 = arith.constant 0 : index
    %c0_11 = arith.constant 0 : index
    %8 = vector.load %arg2[%c0_9, %c2, %c0_10, %c0_11] : memref<1x8x32x64xbf16, #tpu.memory_space<vmem>>, vector<1x1x32x64xbf16>
    %9 = vector.shape_cast %8 : vector<1x1x32x64xbf16> to vector<32x64xbf16>
    %cst_12 = arith.constant dense<0.000000e+00> : vector<32x64xf32>
    %10 = tpu.matmul %0, %9, %cst_12 {dimension_numbers = #tpu.dot_dimension_numbers<[1], [0], [0], [1], [0, 0, 1, 1], [], []>} : vector<32x32xbf16>, vector<32x64xbf16>, vector<32x64xf32> -> vector<32x64xf32>
    %11 = arith.maximumf %7, %10 : vector<32x64xf32>
    %c0_13 = arith.constant 0 : index
    %c3 = arith.constant 3 : index
    %c0_14 = arith.constant 0 : index
    %c0_15 = arith.constant 0 : index
    %12 = vector.load %arg2[%c0_13, %c3, %c0_14, %c0_15] : memref<1x8x32x64xbf16, #tpu.memory_space<vmem>>, vector<1x1x32x64xbf16>
    %13 = vector.shape_cast %12 : vector<1x1x32x64xbf16> to vector<32x64xbf16>
    %cst_16 = arith.constant dense<0.000000e+00> : vector<32x64xf32>
    %14 = tpu.matmul %0, %13, %cst_16 {dimension_numbers = #tpu.dot_dimension_numbers<[1], [0], [0], [1], [0, 0, 1, 1], [], []>} : vector<32x32xbf16>, vector<32x64xbf16>, vector<32x64xf32> -> vector<32x64xf32>
    %15 = arith.maximumf %11, %14 : vector<32x64xf32>
    %c0_17 = arith.constant 0 : index
    %c4 = arith.constant 4 : index
    %c0_18 = arith.constant 0 : index
    %c0_19 = arith.constant 0 : index
    %16 = vector.load %arg2[%c0_17, %c4, %c0_18, %c0_19] : memref<1x8x32x64xbf16, #tpu.memory_space<vmem>>, vector<1x1x32x64xbf16>
    %17 = vector.shape_cast %16 : vector<1x1x32x64xbf16> to vector<32x64xbf16>
    %cst_20 = arith.constant dense<0.000000e+00> : vector<32x64xf32>
    %18 = tpu.matmul %0, %17, %cst_20 {dimension_numbers = #tpu.dot_dimension_numbers<[1], [0], [0], [1], [0, 0, 1, 1], [], []>} : vector<32x32xbf16>, vector<32x64xbf16>, vector<32x64xf32> -> vector<32x64xf32>
    %19 = arith.maximumf %15, %18 : vector<32x64xf32>
    %c0_21 = arith.constant 0 : index
    %c5 = arith.constant 5 : index
    %c0_22 = arith.constant 0 : index
    %c0_23 = arith.constant 0 : index
    %20 = vector.load %arg2[%c0_21, %c5, %c0_22, %c0_23] : memref<1x8x32x64xbf16, #tpu.memory_space<vmem>>, vector<1x1x32x64xbf16>
    %21 = vector.shape_cast %20 : vector<1x1x32x64xbf16> to vector<32x64xbf16>
    %cst_24 = arith.constant dense<0.000000e+00> : vector<32x64xf32>
    %22 = tpu.matmul %0, %21, %cst_24 {dimension_numbers = #tpu.dot_dimension_numbers<[1], [0], [0], [1], [0, 0, 1, 1], [], []>} : vector<32x32xbf16>, vector<32x64xbf16>, vector<32x64xf32> -> vector<32x64xf32>
    %23 = arith.maximumf %19, %22 : vector<32x64xf32>
    %c0_25 = arith.constant 0 : index
    %c6 = arith.constant 6 : index
    %c0_26 = arith.constant 0 : index
    %c0_27 = arith.constant 0 : index
    %24 = vector.load %arg2[%c0_25, %c6, %c0_26, %c0_27] : memref<1x8x32x64xbf16, #tpu.memory_space<vmem>>, vector<1x1x32x64xbf16>
    %25 = vector.shape_cast %24 : vector<1x1x32x64xbf16> to vector<32x64xbf16>
    %cst_28 = arith.constant dense<0.000000e+00> : vector<32x64xf32>
    %26 = tpu.matmul %0, %25, %cst_28 {dimension_numbers = #tpu.dot_dimension_numbers<[1], [0], [0], [1], [0, 0, 1, 1], [], []>} : vector<32x32xbf16>, vector<32x64xbf16>, vector<32x64xf32> -> vector<32x64xf32>
    %27 = arith.maximumf %23, %26 : vector<32x64xf32>
    %c0_29 = arith.constant 0 : index
    %c7 = arith.constant 7 : index
    %c0_30 = arith.constant 0 : index
    %c0_31 = arith.constant 0 : index
    %28 = vector.load %arg2[%c0_29, %c7, %c0_30, %c0_31] : memref<1x8x32x64xbf16, #tpu.memory_space<vmem>>, vector<1x1x32x64xbf16>
    %29 = vector.shape_cast %28 : vector<1x1x32x64xbf16> to vector<32x64xbf16>
    %cst_32 = arith.constant dense<0.000000e+00> : vector<32x64xf32>
    %30 = tpu.matmul %0, %29, %cst_32 {dimension_numbers = #tpu.dot_dimension_numbers<[1], [0], [0], [1], [0, 0, 1, 1], [], []>} : vector<32x32xbf16>, vector<32x64xbf16>, vector<32x64xf32> -> vector<32x64xf32>
    %31 = arith.maximumf %27, %30 : vector<32x64xf32>
    %c0_33 = arith.constant 0 : index
    %c0_34 = arith.constant 0 : index
    %32 = vector.load %arg5[%c0_33, %c0_34] : memref<32x32xbf16, #tpu.memory_space<vmem>>, vector<32x32xbf16>
    %c0_35 = arith.constant 0 : index
    %c0_36 = arith.constant 0 : index
    %c0_37 = arith.constant 0 : index
    %33 = vector.load %arg3[%c0_35, %c0_36, %c0_37] : memref<1x32x64xbf16, #tpu.memory_space<vmem>>, vector<1x32x64xbf16>
    %34 = vector.shape_cast %33 : vector<1x32x64xbf16> to vector<32x64xbf16>
    %cst_38 = arith.constant dense<0.000000e+00> : vector<32x64xf32>
    %35 = tpu.matmul %32, %34, %cst_38 {dimension_numbers = #tpu.dot_dimension_numbers<[1], [0], [0], [1], [0, 0, 1, 1], [], []>} : vector<32x32xbf16>, vector<32x64xbf16>, vector<32x64xf32> -> vector<32x64xf32>
    %36 = arith.addf %31, %35 : vector<32x64xf32>
    %c0_39 = arith.constant 0 : index
    %c0_40 = arith.constant 0 : index
    %37 = vector.load %arg6[%c0_39, %c0_40] : memref<32x1xf32, #tpu.memory_space<vmem>>, vector<32x1xf32>
    %38 = vector.broadcast %37 : vector<32x1xf32> to vector<32x64xf32>
    %39 = arith.addf %36, %38 : vector<32x64xf32>
    %cst_41 = arith.constant 0.000000e+00 : f32
    %40 = vector.broadcast %cst_41 : f32 to vector<32x64xf32>
    %41 = arith.cmpf oge, %39, %40 : vector<32x64xf32>
    %cst_42 = arith.constant 2.000000e-01 : f32
    %42 = vector.broadcast %cst_42 : f32 to vector<32x64xf32>
    %43 = arith.mulf %42, %39 : vector<32x64xf32>
    %44 = arith.select %41, %39, %43 : vector<32x64xi1>, vector<32x64xf32>
    %c0_43 = arith.constant 0 : index
    %c0_44 = arith.constant 0 : index
    %c0_45 = arith.constant 0 : index
    %45 = vector.load %arg7[%c0_43, %c0_44, %c0_45] : memref<1x32x64xf32, #tpu.memory_space<vmem>>, vector<1x32x64xf32>
    %46 = vector.shape_cast %45 : vector<1x32x64xf32> to vector<32x64xf32>
    %47 = vector.shape_cast %44 : vector<32x64xf32> to vector<1x32x64xf32>
    tpu.vector_store %arg7[%c0_43, %c0_44, %c0_45], %47 {strides = array<i32>} : memref<1x32x64xf32, #tpu.memory_space<vmem>>, vector<1x32x64xf32>,
    return
  }
  func.func @transform_0(%arg0: i32, %arg1: i32) -> (i32, i32, i32, i32) {
    %c0_i32 = arith.constant 0 : i32
    %c0_i32_0 = arith.constant 0 : i32
    %c0_i32_1 = arith.constant 0 : i32
    return %arg0, %c0_i32, %c0_i32_0, %arg1 : i32, i32, i32, i32
  }
  func.func @transform_1(%arg0: i32, %arg1: i32) -> (i32, i32, i32) {
    %c0_i32 = arith.constant 0 : i32
    %c0_i32_0 = arith.constant 0 : i32
    return %arg0, %c0_i32, %arg1 : i32, i32, i32
  }
  func.func @transform_2(%arg0: i32, %arg1: i32) -> (i32, i32) {
    %c0_i32 = arith.constant 0 : i32
    %c0_i32_0 = arith.constant 0 : i32
    %c0_i32_1 = arith.constant 0 : i32
    return %c0_i32, %c0_i32_0 : i32, i32
  }
  func.func @transform_3(%arg0: i32, %arg1: i32) -> (i32, i32) {
    %c0_i32 = arith.constant 0 : i32
    %c0_i32_0 = arith.constant 0 : i32
    %c0_i32_1 = arith.constant 0 : i32
    return %c0_i32, %c0_i32_0 : i32, i32
  }
  func.func @transform_4(%arg0: i32, %arg1: i32) -> (i32, i32) {
    %c0_i32 = arith.constant 0 : i32
    %c0_i32_0 = arith.constant 0 : i32
    %c0_i32_1 = arith.constant 0 : i32
    return %c0_i32, %c0_i32_0 : i32, i32
  }
  func.func @transform_5(%arg0: i32, %arg1: i32) -> (i32, i32, i32) {
    %c0_i32 = arith.constant 0 : i32
    %c0_i32_0 = arith.constant 0 : i32
    return %arg0, %c0_i32, %arg1 : i32, i32, i32
  }
}

</mosaic_0001>

<llo_original>
// kernel: _lambda_.2
$region0: #{_lambda_.2}
  #allocation0 [shape = 'u32[]', space=smem, size = 0x4, offset = 0x4, fixed_abs, tag = 'smem constant byte address 0x4 - core index']
  #allocation1 [shape = 'u32[144,128]{1,0:T(1,128)}', space=vmem, size = 0x12000, scoped, tag = 'internal scratch']
  %s0 = inlined_call_operand.vmem [shape: bf16[2,8,3,64], index: 0, kind: input, shape index: {}]
  %s1 = inlined_call_operand.vmem [shape: bf16[2,3,64], index: 1, kind: input, shape index: {}]
  %s2 = inlined_call_operand.vmem [shape: bf16[32,3], index: 2, kind: input, shape index: {}]
  %s3 = inlined_call_operand.vmem [shape: bf16[32,3], index: 3, kind: input, shape index: {}]
  %s4 = inlined_call_operand.vmem [shape: f32[32,1], index: 4, kind: input, shape index: {}]
  %s5 = inlined_call_operand.vmem [shape: f32[2,32,64], index: 5, kind: output, shape index: {}]
  %s6 = sld [smem:[#allocation0]]
  $region53: #{_lambda_.2} parent=0
    _
  %s8 = ssub.s32 1, %s6
  %s9 = scalar_select 0, %s8, %s6
  loop: start=0, step=1, limit=4
  $region2: #{_lambda_.2} parent=0 // loop_pre_header
    _
  $region3: #{_lambda_.2} parent=0 // loop_header
    %s11 = sphi 0, %s15
    %p12 = scmp.ge.s32.totalorder %s11, 4
    %s18 = sphi 0, %s30
    %s19 = sphi 0, %s26
    %s20 = sphi 0, %s18
    %s21 = sphi 0, %s19
    %s22 = sphi 0, %s20
    %s23 = sphi 0, %s21
    %s35 = sphi 0, %s37
    %s38 = sphi 0, %s35
    %s39 = sphi 0, %s38
    %s55 = sphi 0, %s39
    %s63 = sphi 0, %s65
    %s66 = sphi 0, %s63
    %s67 = sphi 0, %s66
    %s83 = sphi 0, %s67
    %s87 = sphi 0, %s87
    %s89 = sphi 0, %s87
    %s90 = sphi 0, %s89
    %s104 = sphi 0, %s90
    %s108 = sphi 0, %s108
    %s110 = sphi 0, %s108
    %s111 = sphi 0, %s110
    %s125 = sphi 0, %s111
    %s129 = sphi 0, %s129
    %s131 = sphi 0, %s129
    %s132 = sphi 0, %s131
    %s146 = sphi 0, %s132
    %s154 = sphi 0, %s156
    %s157 = sphi 0, %s154
    %s158 = sphi 0, %s157
    %s174 = sphi 0, %s158
  $region4: #{_lambda_.2} parent=0 // loop_header_branch
    %14 = sbr.rel (%p12) target = $region8
  $region5: #{_lambda_.2} parent=0 // loop_body
    %s16 = ssub.s32 %s11, 1
    %s17 = ssub.s32 %s11, 2
    %s24 = sadd.s32 1, %s19
    %p25 = scmp.ge.s32.totalorder %s24, 1
    %s26 = scalar_select %p25, 0, %s24
    %s27 = sadd.s32 1, %s18
    %s28 = scalar_select %p25, %s27, %s18
    %p29 = scmp.ge.s32.totalorder %s28, 2
    %s30 = scalar_select %p29, 0, %s28
    %s31 = ssub.s32 %s18, %s30
    %s32 = ssub.s32 %s19, %s26
    %s33 = sor.u32 %s31, %s32
    %p34 = scmp.eq.s32.totalorder %s33, 0
    %s36 = sadd.s32 %s35, 1
    %s37 = scalar_select %p34, %s35, %s36
    %p40 = pneg %p34
    %p41 = scmp.eq.s32.totalorder %s11, 1
    %p42 = por %p40, %p41
    %p43 = scmp.ne.s32.totalorder %s35, %s38
    %p44 = scmp.eq.s32.totalorder %s11, 0
    %p45 = por %p43, %p44
    %p46 = scmp.ne.s32.totalorder %s35, %s38
    %p47 = scmp.eq.s32.totalorder %s16, 1
    %p48 = por %p46, %p47
    %p49 = scmp.ne.s32.totalorder %s38, %s39
    %p50 = scmp.eq.s32.totalorder %s16, 0
    %p51 = por %p49, %p50
    %p52 = scmp.ne.s32.totalorder %s38, %s39
    %p53 = scmp.eq.s32.totalorder %s17, 1
    %p54 = por %p52, %p53
    %p56 = scmp.ne.s32.totalorder %s39, %s55
    %p57 = scmp.eq.s32.totalorder %s17, 0
    %p58 = por %p56, %p57
    %s59 = ssub.s32 %s18, %s30
    %s60 = ssub.s32 %s19, %s26
    %s61 = sor.u32 %s59, %s60
    %p62 = scmp.eq.s32.totalorder %s61, 0
    %s64 = sadd.s32 %s63, 1
    %s65 = scalar_select %p62, %s63, %s64
    %p68 = pneg %p62
    %p69 = scmp.eq.s32.totalorder %s11, 1
    %p70 = por %p68, %p69
    %p71 = scmp.ne.s32.totalorder %s63, %s66
    %p72 = scmp.eq.s32.totalorder %s11, 0
    %p73 = por %p71, %p72
    %p74 = scmp.ne.s32.totalorder %s63, %s66
    %p75 = scmp.eq.s32.totalorder %s16, 1
    %p76 = por %p74, %p75
    %p77 = scmp.ne.s32.totalorder %s66, %s67
    %p78 = scmp.eq.s32.totalorder %s16, 0
    %p79 = por %p77, %p78
    %p80 = scmp.ne.s32.totalorder %s66, %s67
    %p81 = scmp.eq.s32.totalorder %s17, 1
    %p82 = por %p80, %p81
    %p84 = scmp.ne.s32.totalorder %s67, %s83
    %p85 = scmp.eq.s32.totalorder %s17, 0
    %p86 = por %p84, %p85
    %s88 = sadd.s32 %s87, 1
    %p91 = scmp.eq.s32.totalorder %s11, 1
    %p92 = scmp.ne.s32.totalorder %s87, %s89
    %p93 = scmp.eq.s32.totalorder %s11, 0
    %p94 = por %p92, %p93
    %p95 = scmp.ne.s32.totalorder %s87, %s89
    %p96 = scmp.eq.s32.totalorder %s16, 1
    %p97 = por %p95, %p96
    %p98 = scmp.ne.s32.totalorder %s89, %s90
    %p99 = scmp.eq.s32.totalorder %s16, 0
    %p100 = por %p98, %p99
    %p101 = scmp.ne.s32.totalorder %s89, %s90
    %p102 = scmp.eq.s32.totalorder %s17, 1
    %p103 = por %p101, %p102
    %p105 = scmp.ne.s32.totalorder %s90, %s104
    %p106 = scmp.eq.s32.totalorder %s17, 0
    %p107 = por %p105, %p106
    %s109 = sadd.s32 %s108, 1
    %p112 = scmp.eq.s32.totalorder %s11, 1
    %p113 = scmp.ne.s32.totalorder %s108, %s110
    %p114 = scmp.eq.s32.totalorder %s11, 0
    %p115 = por %p113, %p114
    %p116 = scmp.ne.s32.totalorder %s108, %s110
    %p117 = scmp.eq.s32.totalorder %s16, 1
    %p118 = por %p116, %p117
    %p119 = scmp.ne.s32.totalorder %s110, %s111
    %p120 = scmp.eq.s32.totalorder %s16, 0
    %p121 = por %p119, %p120
    %p122 = scmp.ne.s32.totalorder %s110, %s111
    %p123 = scmp.eq.s32.totalorder %s17, 1
    %p124 = por %p122, %p123
    %p126 = scmp.ne.s32.totalorder %s111, %s125
    %p127 = scmp.eq.s32.totalorder %s17, 0
    %p128 = por %p126, %p127
    %s130 = sadd.s32 %s129, 1
    %p133 = scmp.eq.s32.totalorder %s11, 1
    %p134 = scmp.ne.s32.totalorder %s129, %s131
    %p135 = scmp.eq.s32.totalorder %s11, 0
    %p136 = por %p134, %p135
    %p137 = scmp.ne.s32.totalorder %s129, %s131
    %p138 = scmp.eq.s32.totalorder %s16, 1
    %p139 = por %p137, %p138
    %p140 = scmp.ne.s32.totalorder %s131, %s132
    %p141 = scmp.eq.s32.totalorder %s16, 0
    %p142 = por %p140, %p141
    %p143 = scmp.ne.s32.totalorder %s131, %s132
    %p144 = scmp.eq.s32.totalorder %s17, 1
    %p145 = por %p143, %p144
    %p147 = scmp.ne.s32.totalorder %s132, %s146
    %p148 = scmp.eq.s32.totalorder %s17, 0
    %p149 = por %p147, %p148
    %s150 = ssub.s32 %s18, %s30
    %s151 = ssub.s32 %s19, %s26
    %s152 = sor.u32 %s150, %s151
    %p153 = scmp.eq.s32.totalorder %s152, 0
    %s155 = sadd.s32 %s154, 1
    %s156 = scalar_select %p153, %s154, %s155
    %p159 = pneg %p153
    %p160 = scmp.eq.s32.totalorder %s11, 1
    %p161 = por %p159, %p160
    %p162 = scmp.ne.s32.totalorder %s154, %s157
    %p163 = scmp.eq.s32.totalorder %s11, 0
    %p164 = por %p162, %p163
    %p165 = scmp.ne.s32.totalorder %s154, %s157
    %p166 = scmp.eq.s32.totalorder %s16, 1
    %p167 = por %p165, %p166
    %p168 = scmp.ne.s32.totalorder %s157, %s158
    %p169 = scmp.eq.s32.totalorder %s16, 0
    %p170 = por %p168, %p169
    %p171 = scmp.ne.s32.totalorder %s157, %s158
    %p172 = scmp.eq.s32.totalorder %s17, 1
    %p173 = por %p171, %p172
    %p175 = scmp.ne.s32.totalorder %s158, %s174
    %p176 = scmp.eq.s32.totalorder %s17, 0
    %p177 = por %p175, %p176
    %p178 = scmp.le.s32.totalorder 1, %s11
    %p179 = scmp.lt.s32.totalorder %s11, 3
    %p180 = pnand %p178, %p179
    %p181 = pneg %p180
    // Predicated region
    $region9: #{_lambda_.2} parent=5 // pred_check
      _
    $region10: #{_lambda_.2} parent=5 // pred_check_branch
      %183 = sbr.rel (%p180) target = $region12
    $region11: #{_lambda_.2} parent=5 // pred_region
      %s184 = ssub.s32 %s11, 1
      // Predicated region
      $region13: #{_lambda_.2} parent=11 // pred_check
        %p185 = pneg %p100
      $region14: #{_lambda_.2} parent=11 // pred_check_branch
        %187 = sbr.rel (%p185) target = $region16
      $region15: #{_lambda_.2} parent=11 // pred_region
        _
      $region16: #{_lambda_.2} parent=11 // pred_fallthru
        _
      // Predicated region
      $region17: #{_lambda_.2} parent=11 // pred_check
        %p188 = pneg %p121
      $region18: #{_lambda_.2} parent=11 // pred_check_branch
        %190 = sbr.rel (%p188) target = $region20
      $region19: #{_lambda_.2} parent=11 // pred_region
        _
      $region20: #{_lambda_.2} parent=11 // pred_fallthru
        _
      // Predicated region
      $region21: #{_lambda_.2} parent=11 // pred_check
        %p191 = pneg %p142
      $region22: #{_lambda_.2} parent=11 // pred_check_branch
        %193 = sbr.rel (%p191) target = $region24
      $region23: #{_lambda_.2} parent=11 // pred_region
        _
      $region24: #{_lambda_.2} parent=11 // pred_fallthru
        _
    $region12: #{_lambda_.2} parent=5 // pred_fallthru
      _
    %p194 = scmp.lt.s32.totalorder %s11, 2
    // Predicated region
    $region25: #{_lambda_.2} parent=5 // pred_check
      %p195 = pneg %p194
    $region26: #{_lambda_.2} parent=5 // pred_check_branch
      %197 = sbr.rel (%p195) target = $region28
    $region27: #{_lambda_.2} parent=5 // pred_region
      // Predicated region
      $region29: #{_lambda_.2} parent=27 // pred_check
        %p198 = pneg %p45
      $region30: #{_lambda_.2} parent=27 // pred_check_branch
        %200 = sbr.rel (%p198) target = $region32
      $region31: #{_lambda_.2} parent=27 // pred_region
        %p201 = scmp.lt.s32.totalorder %s18, 1
        %s202 = scalar_select %p201, %s18, 1
        %p203 = scmp.lt.s32.totalorder %s19, 0
        %s204 = scalar_select %p203, %s19, 0
        %s205 = smul.addr %s202, 8
        %s206 = sadd.s32 %s204, %s205
        %s207 = smul.addr %s206, 2
        %s208 = scalar_lea.vmem %s0, %s207
      $region32: #{_lambda_.2} parent=27 // pred_fallthru
        _
      // Predicated region
      $region33: #{_lambda_.2} parent=27 // pred_check
        %p209 = pneg %p73
      $region34: #{_lambda_.2} parent=27 // pred_check_branch
        %211 = sbr.rel (%p209) target = $region36
      $region35: #{_lambda_.2} parent=27 // pred_region
        %p212 = scmp.lt.s32.totalorder %s18, 1
        %s213 = scalar_select %p212, %s18, 1
        %p214 = scmp.lt.s32.totalorder %s19, 0
        %s215 = scalar_select %p214, %s19, 0
        %s216 = sadd.s32 %s215, %s213
        %s217 = smul.addr %s216, 2
        %s218 = scalar_lea.vmem %s1, %s217
      $region36: #{_lambda_.2} parent=27 // pred_fallthru
        _
    $region28: #{_lambda_.2} parent=5 // pred_fallthru
      _
    %p219 = scmp.le.s32.totalorder 1, %s11
    %p220 = scmp.lt.s32.totalorder %s11, 3
    %p221 = pnand %p219, %p220
    %p222 = pneg %p221
    // Predicated region
    $region37: #{_lambda_.2} parent=5 // pred_check
      _
    $region38: #{_lambda_.2} parent=5 // pred_check_branch
      %224 = sbr.rel (%p221) target = $region40
    $region39: #{_lambda_.2} parent=5 // pred_region
      %s225 = ssub.s32 %s11, 1
      %p226 = scmp.lt.s32.totalorder %s20, 1
      %s227 = scalar_select %p226, %s20, 1
      %p228 = scmp.lt.s32.totalorder %s21, 0
      %s229 = scalar_select %p228, %s21, 0
      %s230 = smul.addr %s227, 8
      %s231 = sadd.s32 %s229, %s230
      %s232 = smul.addr %s231, 2
      %s233 = scalar_lea.vmem %s0, %s232
      %p234 = pneg %p51
      %p235 = pneg %p48
      %p236 = scmp.lt.s32.totalorder %s20, 1
      %s237 = scalar_select %p236, %s20, 1
      %p238 = scmp.lt.s32.totalorder %s21, 0
      %s239 = scalar_select %p238, %s21, 0
      %s240 = sadd.s32 %s239, %s237
      %s241 = smul.addr %s240, 2
      %s242 = scalar_lea.vmem %s1, %s241
      %p243 = pneg %p79
      %p244 = pneg %p76
      %p245 = pneg %p100
      %p246 = pneg %p97
      %p247 = pneg %p121
      %p248 = pneg %p118
      %p249 = pneg %p142
      %p250 = pneg %p139
      %p251 = pneg %p170
      %p252 = pneg %p167
      %p253 = scmp.lt.s32.totalorder %s20, 1
      %s254 = scalar_select %p253, %s20, 1
      %p255 = scmp.lt.s32.totalorder %s21, 0
      %s256 = scalar_select %p255, %s21, 0
      %s257 = smul.addr %s254, 4
      %s258 = sadd.s32 %s256, %s257
      %s259 = smul.addr %s258, 8
      %s260 = scalar_lea.vmem %s5, %s259
      %p261 = scmp.lt.s32.totalorder %s20, 1
      %s262 = scalar_select %p261, %s20, 1
      %p263 = scmp.lt.s32.totalorder %s21, 0
      %s264 = scalar_select %p263, %s21, 0
      %s265 = smul.addr %s262, 8
      %s266 = sadd.s32 %s264, %s265
      %s267 = smul.addr %s266, 2
      %s268 = scalar_lea.vmem %s0, %s267
      %p269 = scmp.lt.s32.totalorder %s20, 1
      %s270 = scalar_select %p269, %s20, 1
      %p271 = scmp.lt.s32.totalorder %s21, 0
      %s272 = scalar_select %p271, %s21, 0
      %s273 = sadd.s32 %s272, %s270
      %s274 = smul.addr %s273, 2
      %s275 = scalar_lea.vmem %s1, %s274
      %p276 = scmp.lt.s32.totalorder %s20, 1
      %s277 = scalar_select %p276, %s20, 1
      %p278 = scmp.lt.s32.totalorder %s21, 0
      %s279 = scalar_select %p278, %s21, 0
      %s280 = smul.addr %s277, 4
      %s281 = sadd.s32 %s279, %s280
      %s282 = smul.addr %s281, 8
      %s283 = scalar_lea.vmem %s5, %s282
      %v285 = vld [vmem:[%s2] sm:$0xf]
      %v286 = vld [vmem:[%s2 + $0x4] sm:$0xf]
      %v287 = vld [vmem:[%s2 + $0x8] sm:$0xf]
      %v288 = vld [vmem:[%s2 + $0xc] sm:$0xf]
      %v289 = vld [vmem:[%s268] sm:$0x3]
      %v294 = vunpack.c.l.b16 %v285
      %v295 = vunpack.c.l.b16 %v286
      %v296 = vunpack.c.l.b16 %v287
      %v297 = vunpack.c.l.b16 %v288
      %v298 = vpack.c.b16 %v295, %v294
      %v299 = vpack.c.b16 %v297, %v296
      %vm300 = vcmask 23552
      %v302 = vsel %vm300, %v298, 0
      %v305 = vsel %vm300, %v299, 0
      %vm307 = vcmask 1040384
      %vm308 = vcmask 1041408
      %v309 = vsel %vm307, 4294967295, 65535
      %v310 = vsel %vm308, %v309, 0
      %v312 = vand.u32 %v289, %v310
      %314 = vmatprep.subr.bf16.mxu0 0
      %315 = vmatpush1.bf16.msra.mxu0 %v312
      %316 = vmatprep.subr.bf16.mxu0 0
      %317 = vmatpush1.bf16.msra.mxu0 0
      %318 = vmatprep.subr.bf16.mxu0 0
      %319 = vmatpush1.bf16.msra.mxu0 0
      %320 = vmatprep.subr.bf16.mxu0 0
      %321 = vmatpush1.bf16.msra.mxu0 0
      %322 = vmatprep.subr.bf16.mxu0 0
      %323 = vmatpush1.bf16.msra.mxu0 0
      %324 = vmatprep.subr.bf16.mxu0 0
      %325 = vmatpush1.bf16.msra.mxu0 0
      %326 = vmatprep.subr.bf16.mxu0 0
      %327 = vmatpush1.bf16.msra.mxu0 0
      %328 = vmatprep.subr.bf16.mxu0 0
      %329 = vmatpush1.bf16.msra.mxu0 0
      %330 = vmatprep.subr.bf16.mxu0 0
      %331 = vmatpush1.bf16.msra.mxu0 0
      %332 = vmatprep.subr.bf16.mxu0 0
      %333 = vmatpush1.bf16.msra.mxu0 0
      %334 = vmatprep.subr.bf16.mxu0 0
      %335 = vmatpush1.bf16.msra.mxu0 0
      %336 = vmatprep.subr.bf16.mxu0 0
      %337 = vmatpush1.bf16.msra.mxu0 0
      %338 = vmatprep.subr.bf16.mxu0 0
      %339 = vmatpush1.bf16.msra.mxu0 0
      %340 = vmatprep.subr.bf16.mxu0 0
      %341 = vmatpush1.bf16.msra.mxu0 0
      %342 = vmatprep.subr.bf16.mxu0 0
      %343 = vmatpush1.bf16.msra.mxu0 0
      %344 = vmatprep.subr.bf16.mxu0 0
      %345 = vmatpush1.bf16.msra.mxu0 0
      %346 = vmatprep.mubr.bf16.mxu0 0
      %347 = vmatmul.mubr.bf16.gmra.mrb[0].mxu0 %v302
      %v348 = vpop.f32.mrb[0].mxu0
      %v349 = vadd.f32 0.0, %v348
      %v350 = vpop.f32.mrb[0].mxu0
      %v351 = vpop.f32.mrb[0].mxu0
      %v352 = vadd.f32 0.0, %v351
      %v353 = vpop.f32.mrb[0].mxu0
      %354 = vmatprep.mubr.bf16.mxu0 0
      %355 = vmatmul.mubr.bf16.gmra.mrb[0].mxu0 %v305
      %v356 = vpop.f32.mrb[0].mxu0
      %v357 = vadd.f32 0.0, %v356
      %v358 = vpop.f32.mrb[0].mxu0
      %v359 = vpop.f32.mrb[0].mxu0
      %v360 = vadd.f32 0.0, %v359
      %v361 = vpop.f32.mrb[0].mxu0
      %362 = vdwg.mxu0
      %s363 = scalar_lea.vmem %s268, 2
      %v364 = vld [vmem:[%s363] sm:$0x3]
      %v366 = vand.u32 %v364, %v310
      %368 = vmatprep.subr.bf16.mxu0 0
      %369 = vmatpush1.bf16.msra.mxu0 %v366
      %370 = vmatprep.subr.bf16.mxu0 0
      %371 = vmatpush1.bf16.msra.mxu0 0
      %372 = vmatprep.subr.bf16.mxu0 0
      %373 = vmatpush1.bf16.msra.mxu0 0
      %374 = vmatprep.subr.bf16.mxu0 0
      %375 = vmatpush1.bf16.msra.mxu0 0
      %376 = vmatprep.subr.bf16.mxu0 0
      %377 = vmatpush1.bf16.msra.mxu0 0
      %378 = vmatprep.subr.bf16.mxu0 0
      %379 = vmatpush1.bf16.msra.mxu0 0
      %380 = vmatprep.subr.bf16.mxu0 0
      %381 = vmatpush1.bf16.msra.mxu0 0
      %382 = vmatprep.subr.bf16.mxu0 0
      %383 = vmatpush1.bf16.msra.mxu0 0
      %384 = vmatprep.subr.bf16.mxu0 0
      %385 = vmatpush1.bf16.msra.mxu0 0
      %386 = vmatprep.subr.bf16.mxu0 0
      %387 = vmatpush1.bf16.msra.mxu0 0
      %388 = vmatprep.subr.bf16.mxu0 0
      %389 = vmatpush1.bf16.msra.mxu0 0
      %390 = vmatprep.subr.bf16.mxu0 0
      %391 = vmatpush1.bf16.msra.mxu0 0
      %392 = vmatprep.subr.bf16.mxu0 0
      %393 = vmatpush1.bf16.msra.mxu0 0
      %394 = vmatprep.subr.bf16.mxu0 0
      %395 = vmatpush1.bf16.msra.mxu0 0
      %396 = vmatprep.subr.bf16.mxu0 0
      %397 = vmatpush1.bf16.msra.mxu0 0
      %398 = vmatprep.subr.bf16.mxu0 0
      %399 = vmatpush1.bf16.msra.mxu0 0
      %400 = vmatprep.mubr.bf16.mxu0 0
      %401 = vmatmul.mubr.bf16.gmra.mrb[0].mxu0 %v302
      %v402 = vpop.f32.mrb[0].mxu0
      %v403 = vadd.f32 0.0, %v402
      %v404 = vpop.f32.mrb[0].mxu0
      %v405 = vpop.f32.mrb[0].mxu0
      %v406 = vadd.f32 0.0, %v405
      %v407 = vpop.f32.mrb[0].mxu0
      %408 = vmatprep.mubr.bf16.mxu0 0
      %409 = vmatmul.mubr.bf16.gmra.mrb[0].mxu0 %v305
      %v410 = vpop.f32.mrb[0].mxu0
      %v411 = vadd.f32 0.0, %v410
      %v412 = vpop.f32.mrb[0].mxu0
      %v413 = vpop.f32.mrb[0].mxu0
      %v414 = vadd.f32 0.0, %v413
      %v415 = vpop.f32.mrb[0].mxu0
      %416 = vdwg.mxu0
      %v417 = vmax.f32 %v349, %v403
      %v418 = vmax.f32 %v352, %v406
      %v419 = vmax.f32 %v357, %v411
      %v420 = vmax.f32 %v360, %v414
      %s421 = scalar_lea.vmem %s268, 4
      %v422 = vld [vmem:[%s421] sm:$0x3]
      %v424 = vand.u32 %v422, %v310
      %426 = vmatprep.subr.bf16.mxu0 0
      %427 = vmatpush1.bf16.msra.mxu0 %v424
      %428 = vmatprep.subr.bf16.mxu0 0
      %429 = vmatpush1.bf16.msra.mxu0 0
      %430 = vmatprep.subr.bf16.mxu0 0
      %431 = vmatpush1.bf16.msra.mxu0 0
      %432 = vmatprep.subr.bf16.mxu0 0
      %433 = vmatpush1.bf16.msra.mxu0 0
      %434 = vmatprep.subr.bf16.mxu0 0
      %435 = vmatpush1.bf16.msra.mxu0 0
      %436 = vmatprep.subr.bf16.mxu0 0
      %437 = vmatpush1.bf16.msra.mxu0 0
      %438 = vmatprep.subr.bf16.mxu0 0
      %439 = vmatpush1.bf16.msra.mxu0 0
      %440 = vmatprep.subr.bf16.mxu0 0
      %441 = vmatpush1.bf16.msra.mxu0 0
      %442 = vmatprep.subr.bf16.mxu0 0
      %443 = vmatpush1.bf16.msra.mxu0 0
      %444 = vmatprep.subr.bf16.mxu0 0
      %445 = vmatpush1.bf16.msra.mxu0 0
      %446 = vmatprep.subr.bf16.mxu0 0
      %447 = vmatpush1.bf16.msra.mxu0 0
      %448 = vmatprep.subr.bf16.mxu0 0
      %449 = vmatpush1.bf16.msra.mxu0 0
      %450 = vmatprep.subr.bf16.mxu0 0
      %451 = vmatpush1.bf16.msra.mxu0 0
      %452 = vmatprep.subr.bf16.mxu0 0
      %453 = vmatpush1.bf16.msra.mxu0 0
      %454 = vmatprep.subr.bf16.mxu0 0
      %455 = vmatpush1.bf16.msra.mxu0 0
      %456 = vmatprep.subr.bf16.mxu0 0
      %457 = vmatpush1.bf16.msra.mxu0 0
      %458 = vmatprep.mubr.bf16.mxu0 0
      %459 = vmatmul.mubr.bf16.gmra.mrb[0].mxu0 %v302
      %v460 = vpop.f32.mrb[0].mxu0
      %v461 = vadd.f32 0.0, %v460
      %v462 = vpop.f32.mrb[0].mxu0
      %v463 = vpop.f32.mrb[0].mxu0
      %v464 = vadd.f32 0.0, %v463
      %v465 = vpop.f32.mrb[0].mxu0
      %466 = vmatprep.mubr.bf16.mxu0 0
      %467 = vmatmul.mubr.bf16.gmra.mrb[0].mxu0 %v305
      %v468 = vpop.f32.mrb[0].mxu0
      %v469 = vadd.f32 0.0, %v468
      %v470 = vpop.f32.mrb[0].mxu0
      %v471 = vpop.f32.mrb[0].mxu0
      %v472 = vadd.f32 0.0, %v471
      %v473 = vpop.f32.mrb[0].mxu0
      %474 = vdwg.mxu0
      %v475 = vmax.f32 %v417, %v461
      %v476 = vmax.f32 %v418, %v464
      %v477 = vmax.f32 %v419, %v469
      %v478 = vmax.f32 %v420, %v472
      %s479 = scalar_lea.vmem %s268, 6
      %v480 = vld [vmem:[%s479] sm:$0x3]
      %v482 = vand.u32 %v480, %v310
      %484 = vmatprep.subr.bf16.mxu0 0
      %485 = vmatpush1.bf16.msra.mxu0 %v482
      %486 = vmatprep.subr.bf16.mxu0 0
      %487 = vmatpush1.bf16.msra.mxu0 0
      %488 = vmatprep.subr.bf16.mxu0 0
      %489 = vmatpush1.bf16.msra.mxu0 0
      %490 = vmatprep.subr.bf16.mxu0 0
      %491 = vmatpush1.bf16.msra.mxu0 0
      %492 = vmatprep.subr.bf16.mxu0 0
      %493 = vmatpush1.bf16.msra.mxu0 0
      %494 = vmatprep.subr.bf16.mxu0 0
      %495 = vmatpush1.bf16.msra.mxu0 0
      %496 = vmatprep.subr.bf16.mxu0 0
      %497 = vmatpush1.bf16.msra.mxu0 0
      %498 = vmatprep.subr.bf16.mxu0 0
      %499 = vmatpush1.bf16.msra.mxu0 0
      %500 = vmatprep.subr.bf16.mxu0 0
      %501 = vmatpush1.bf16.msra.mxu0 0
      %502 = vmatprep.subr.bf16.mxu0 0
      %503 = vmatpush1.bf16.msra.mxu0 0
      %504 = vmatprep.subr.bf16.mxu0 0
      %505 = vmatpush1.bf16.msra.mxu0 0
      %506 = vmatprep.subr.bf16.mxu0 0
      %507 = vmatpush1.bf16.msra.mxu0 0
      %508 = vmatprep.subr.bf16.mxu0 0
      %509 = vmatpush1.bf16.msra.mxu0 0
      %510 = vmatprep.subr.bf16.mxu0 0
      %511 = vmatpush1.bf16.msra.mxu0 0
      %512 = vmatprep.subr.bf16.mxu0 0
      %513 = vmatpush1.bf16.msra.mxu0 0
      %514 = vmatprep.subr.bf16.mxu0 0
      %515 = vmatpush1.bf16.msra.mxu0 0
      %516 = vmatprep.mubr.bf16.mxu0 0
      %517 = vmatmul.mubr.bf16.gmra.mrb[0].mxu0 %v302
      %v518 = vpop.f32.mrb[0].mxu0
      %v519 = vadd.f32 0.0, %v518
      %v520 = vpop.f32.mrb[0].mxu0
      %v521 = vpop.f32.mrb[0].mxu0
      %v522 = vadd.f32 0.0, %v521
      %v523 = vpop.f32.mrb[0].mxu0
      %524 = vmatprep.mubr.bf16.mxu0 0
      %525 = vmatmul.mubr.bf16.gmra.mrb[0].mxu0 %v305
      %v526 = vpop.f32.mrb[0].mxu0
      %v527 = vadd.f32 0.0, %v526
      %v528 = vpop.f32.mrb[0].mxu0
      %v529 = vpop.f32.mrb[0].mxu0
      %v530 = vadd.f32 0.0, %v529
      %v531 = vpop.f32.mrb[0].mxu0
      %532 = vdwg.mxu0
      %v533 = vmax.f32 %v475, %v519
      %v534 = vmax.f32 %v476, %v522
      %v535 = vmax.f32 %v477, %v527
      %v536 = vmax.f32 %v478, %v530
      %s537 = scalar_lea.vmem %s268, 8
      %v538 = vld [vmem:[%s537] sm:$0x3]
      %v540 = vand.u32 %v538, %v310
      %542 = vmatprep.subr.bf16.mxu0 0
      %543 = vmatpush1.bf16.msra.mxu0 %v540
      %544 = vmatprep.subr.bf16.mxu0 0
      %545 = vmatpush1.bf16.msra.mxu0 0
      %546 = vmatprep.subr.bf16.mxu0 0
      %547 = vmatpush1.bf16.msra.mxu0 0
      %548 = vmatprep.subr.bf16.mxu0 0
      %549 = vmatpush1.bf16.msra.mxu0 0
      %550 = vmatprep.subr.bf16.mxu0 0
      %551 = vmatpush1.bf16.msra.mxu0 0
      %552 = vmatprep.subr.bf16.mxu0 0
      %553 = vmatpush1.bf16.msra.mxu0 0
      %554 = vmatprep.subr.bf16.mxu0 0
      %555 = vmatpush1.bf16.msra.mxu0 0
      %556 = vmatprep.subr.bf16.mxu0 0
      %557 = vmatpush1.bf16.msra.mxu0 0
      %558 = vmatprep.subr.bf16.mxu0 0
      %559 = vmatpush1.bf16.msra.mxu0 0
      %560 = vmatprep.subr.bf16.mxu0 0
      %561 = vmatpush1.bf16.msra.mxu0 0
      %562 = vmatprep.subr.bf16.mxu0 0
      %563 = vmatpush1.bf16.msra.mxu0 0
      %564 = vmatprep.subr.bf16.mxu0 0
      %565 = vmatpush1.bf16.msra.mxu0 0
      %566 = vmatprep.subr.bf16.mxu0 0
      %567 = vmatpush1.bf16.msra.mxu0 0
      %568 = vmatprep.subr.bf16.mxu0 0
      %569 = vmatpush1.bf16.msra.mxu0 0
      %570 = vmatprep.subr.bf16.mxu0 0
      %571 = vmatpush1.bf16.msra.mxu0 0
      %572 = vmatprep.subr.bf16.mxu0 0
      %573 = vmatpush1.bf16.msra.mxu0 0
      %574 = vmatprep.mubr.bf16.mxu0 0
      %575 = vmatmul.mubr.bf16.gmra.mrb[0].mxu0 %v302
      %v576 = vpop.f32.mrb[0].mxu0
      %v577 = vadd.f32 0.0, %v576
      %v578 = vpop.f32.mrb[0].mxu0
      %v579 = vpop.f32.mrb[0].mxu0
      %v580 = vadd.f32 0.0, %v579
      %v581 = vpop.f32.mrb[0].mxu0
      %582 = vmatprep.mubr.bf16.mxu0 0
      %583 = vmatmul.mubr.bf16.gmra.mrb[0].mxu0 %v305
      %v584 = vpop.f32.mrb[0].mxu0
      %v585 = vadd.f32 0.0, %v584
      %v586 = vpop.f32.mrb[0].mxu0
      %v587 = vpop.f32.mrb[0].mxu0
      %v588 = vadd.f32 0.0, %v587
      %v589 = vpop.f32.mrb[0].mxu0
      %590 = vdwg.mxu0
      %v591 = vmax.f32 %v533, %v577
      %v592 = vmax.f32 %v534, %v580
      %v593 = vmax.f32 %v535, %v585
      %v594 = vmax.f32 %v536, %v588
      %s595 = scalar_lea.vmem %s268, 10
      %v596 = vld [vmem:[%s595] sm:$0x3]
      %v598 = vand.u32 %v596, %v310
      %600 = vmatprep.subr.bf16.mxu0 0
      %601 = vmatpush1.bf16.msra.mxu0 %v598
      %602 = vmatprep.subr.bf16.mxu0 0
      %603 = vmatpush1.bf16.msra.mxu0 0
      %604 = vmatprep.subr.bf16.mxu0 0
      %605 = vmatpush1.bf16.msra.mxu0 0
      %606 = vmatprep.subr.bf16.mxu0 0
      %607 = vmatpush1.bf16.msra.mxu0 0
      %608 = vmatprep.subr.bf16.mxu0 0
      %609 = vmatpush1.bf16.msra.mxu0 0
      %610 = vmatprep.subr.bf16.mxu0 0
      %611 = vmatpush1.bf16.msra.mxu0 0
      %612 = vmatprep.subr.bf16.mxu0 0
      %613 = vmatpush1.bf16.msra.mxu0 0
      %614 = vmatprep.subr.bf16.mxu0 0
      %615 = vmatpush1.bf16.msra.mxu0 0
      %616 = vmatprep.subr.bf16.mxu0 0
      %617 = vmatpush1.bf16.msra.mxu0 0
      %618 = vmatprep.subr.bf16.mxu0 0
      %619 = vmatpush1.bf16.msra.mxu0 0
      %620 = vmatprep.subr.bf16.mxu0 0
      %621 = vmatpush1.bf16.msra.mxu0 0
      %622 = vmatprep.subr.bf16.mxu0 0
      %623 = vmatpush1.bf16.msra.mxu0 0
      %624 = vmatprep.subr.bf16.mxu0 0
      %625 = vmatpush1.bf16.msra.mxu0 0
      %626 = vmatprep.subr.bf16.mxu0 0
      %627 = vmatpush1.bf16.msra.mxu0 0
      %628 = vmatprep.subr.bf16.mxu0 0
      %629 = vmatpush1.bf16.msra.mxu0 0
      %630 = vmatprep.subr.bf16.mxu0 0
      %631 = vmatpush1.bf16.msra.mxu0 0
      %632 = vmatprep.mubr.bf16.mxu0 0
      %633 = vmatmul.mubr.bf16.gmra.mrb[0].mxu0 %v302
      %v634 = vpop.f32.mrb[0].mxu0
      %v635 = vadd.f32 0.0, %v634
      %v636 = vpop.f32.mrb[0].mxu0
      %v637 = vpop.f32.mrb[0].mxu0
      %v638 = vadd.f32 0.0, %v637
      %v639 = vpop.f32.mrb[0].mxu0
      %640 = vmatprep.mubr.bf16.mxu0 0
      %641 = vmatmul.mubr.bf16.gmra.mrb[0].mxu0 %v305
      %v642 = vpop.f32.mrb[0].mxu0
      %v643 = vadd.f32 0.0, %v642
      %v644 = vpop.f32.mrb[0].mxu0
      %v645 = vpop.f32.mrb[0].mxu0
      %v646 = vadd.f32 0.0, %v645
      %v647 = vpop.f32.mrb[0].mxu0
      %648 = vdwg.mxu0
      %v649 = vmax.f32 %v591, %v635
      %v650 = vmax.f32 %v592, %v638
      %v651 = vmax.f32 %v593, %v643
      %v652 = vmax.f32 %v594, %v646
      %s653 = scalar_lea.vmem %s268, 12
      %v654 = vld [vmem:[%s653] sm:$0x3]
      %v656 = vand.u32 %v654, %v310
      %658 = vmatprep.subr.bf16.mxu0 0
      %659 = vmatpush1.bf16.msra.mxu0 %v656
      %660 = vmatprep.subr.bf16.mxu0 0
      %661 = vmatpush1.bf16.msra.mxu0 0
      %662 = vmatprep.subr.bf16.mxu0 0
      %663 = vmatpush1.bf16.msra.mxu0 0
      %664 = vmatprep.subr.bf16.mxu0 0
      %665 = vmatpush1.bf16.msra.mxu0 0
      %666 = vmatprep.subr.bf16.mxu0 0
      %667 = vmatpush1.bf16.msra.mxu0 0
      %668 = vmatprep.subr.bf16.mxu0 0
      %669 = vmatpush1.bf16.msra.mxu0 0
      %670 = vmatprep.subr.bf16.mxu0 0
      %671 = vmatpush1.bf16.msra.mxu0 0
      %672 = vmatprep.subr.bf16.mxu0 0
      %673 = vmatpush1.bf16.msra.mxu0 0
      %674 = vmatprep.subr.bf16.mxu0 0
      %675 = vmatpush1.bf16.msra.mxu0 0
      %676 = vmatprep.subr.bf16.mxu0 0
      %677 = vmatpush1.bf16.msra.mxu0 0
      %678 = vmatprep.subr.bf16.mxu0 0
      %679 = vmatpush1.bf16.msra.mxu0 0
      %680 = vmatprep.subr.bf16.mxu0 0
      %681 = vmatpush1.bf16.msra.mxu0 0
      %682 = vmatprep.subr.bf16.mxu0 0
      %683 = vmatpush1.bf16.msra.mxu0 0
      %684 = vmatprep.subr.bf16.mxu0 0
      %685 = vmatpush1.bf16.msra.mxu0 0
      %686 = vmatprep.subr.bf16.mxu0 0
      %687 = vmatpush1.bf16.msra.mxu0 0
      %688 = vmatprep.subr.bf16.mxu0 0
      %689 = vmatpush1.bf16.msra.mxu0 0
      %690 = vmatprep.mubr.bf16.mxu0 0
      %691 = vmatmul.mubr.bf16.gmra.mrb[0].mxu0 %v302
      %v692 = vpop.f32.mrb[0].mxu0
      %v693 = vadd.f32 0.0, %v692
      %v694 = vpop.f32.mrb[0].mxu0
      %v695 = vpop.f32.mrb[0].mxu0
      %v696 = vadd.f32 0.0, %v695
      %v697 = vpop.f32.mrb[0].mxu0
      %698 = vmatprep.mubr.bf16.mxu0 0
      %699 = vmatmul.mubr.bf16.gmra.mrb[0].mxu0 %v305
      %v700 = vpop.f32.mrb[0].mxu0
      %v701 = vadd.f32 0.0, %v700
      %v702 = vpop.f32.mrb[0].mxu0
      %v703 = vpop.f32.mrb[0].mxu0
      %v704 = vadd.f32 0.0, %v703
      %v705 = vpop.f32.mrb[0].mxu0
      %706 = vdwg.mxu0
      %v707 = vmax.f32 %v649, %v693
      %v708 = vmax.f32 %v650, %v696
      %v709 = vmax.f32 %v651, %v701
      %v710 = vmax.f32 %v652, %v704
      %s711 = scalar_lea.vmem %s268, 14
      %v712 = vld [vmem:[%s711] sm:$0x3]
      %v714 = vand.u32 %v712, %v310
      %716 = vmatprep.subr.bf16.mxu0 0
      %717 = vmatpush1.bf16.msra.mxu0 %v714
      %718 = vmatprep.subr.bf16.mxu0 0
      %719 = vmatpush1.bf16.msra.mxu0 0
      %720 = vmatprep.subr.bf16.mxu0 0
      %721 = vmatpush1.bf16.msra.mxu0 0
      %722 = vmatprep.subr.bf16.mxu0 0
      %723 = vmatpush1.bf16.msra.mxu0 0
      %724 = vmatprep.subr.bf16.mxu0 0
      %725 = vmatpush1.bf16.msra.mxu0 0
      %726 = vmatprep.subr.bf16.mxu0 0
      %727 = vmatpush1.bf16.msra.mxu0 0
      %728 = vmatprep.subr.bf16.mxu0 0
      %729 = vmatpush1.bf16.msra.mxu0 0
      %730 = vmatprep.subr.bf16.mxu0 0
      %731 = vmatpush1.bf16.msra.mxu0 0
      %732 = vmatprep.subr.bf16.mxu0 0
      %733 = vmatpush1.bf16.msra.mxu0 0
      %734 = vmatprep.subr.bf16.mxu0 0
      %735 = vmatpush1.bf16.msra.mxu0 0
      %736 = vmatprep.subr.bf16.mxu0 0
      %737 = vmatpush1.bf16.msra.mxu0 0
      %738 = vmatprep.subr.bf16.mxu0 0
      %739 = vmatpush1.bf16.msra.mxu0 0
      %740 = vmatprep.subr.bf16.mxu0 0
      %741 = vmatpush1.bf16.msra.mxu0 0
      %742 = vmatprep.subr.bf16.mxu0 0
      %743 = vmatpush1.bf16.msra.mxu0 0
      %744 = vmatprep.subr.bf16.mxu0 0
      %745 = vmatpush1.bf16.msra.mxu0 0
      %746 = vmatprep.subr.bf16.mxu0 0
      %747 = vmatpush1.bf16.msra.mxu0 0
      %748 = vmatprep.mubr.bf16.mxu0 0
      %749 = vmatmul.mubr.bf16.gmra.mrb[0].mxu0 %v302
      %v750 = vpop.f32.mrb[0].mxu0
      %v751 = vadd.f32 0.0, %v750
      %v752 = vpop.f32.mrb[0].mxu0
      %v753 = vpop.f32.mrb[0].mxu0
      %v754 = vadd.f32 0.0, %v753
      %v755 = vpop.f32.mrb[0].mxu0
      %756 = vmatprep.mubr.bf16.mxu0 0
      %757 = vmatmul.mubr.bf16.gmra.mrb[0].mxu0 %v305
      %v758 = vpop.f32.mrb[0].mxu0
      %v759 = vadd.f32 0.0, %v758
      %v760 = vpop.f32.mrb[0].mxu0
      %v761 = vpop.f32.mrb[0].mxu0
      %v762 = vadd.f32 0.0, %v761
      %v763 = vpop.f32.mrb[0].mxu0
      %764 = vdwg.mxu0
      %v765 = vmax.f32 %v707, %v751
      %v766 = vmax.f32 %v708, %v754
      %v767 = vmax.f32 %v709, %v759
      %v768 = vmax.f32 %v710, %v762
      %v769 = vld [vmem:[%s3] sm:$0xf]
      %v770 = vld [vmem:[%s3 + $0x4] sm:$0xf]
      %v771 = vld [vmem:[%s3 + $0x8] sm:$0xf]
      %v772 = vld [vmem:[%s3 + $0xc] sm:$0xf]
      %v773 = vld [vmem:[%s275] sm:$0x3]
      %v778 = vunpack.c.l.b16 %v769
      %v779 = vunpack.c.l.b16 %v770
      %v780 = vunpack.c.l.b16 %v771
      %v781 = vunpack.c.l.b16 %v772
      %v782 = vpack.c.b16 %v779, %v778
      %v783 = vpack.c.b16 %v781, %v780
      %v785 = vsel %vm300, %v782, 0
      %v788 = vsel %vm300, %v783, 0
      %v791 = vand.u32 %v773, %v310
      %793 = vmatprep.subr.bf16.mxu0 0
      %794 = vmatpush1.bf16.msra.mxu0 %v791
      %795 = vmatprep.subr.bf16.mxu0 0
      %796 = vmatpush1.bf16.msra.mxu0 0
      %797 = vmatprep.subr.bf16.mxu0 0
      %798 = vmatpush1.bf16.msra.mxu0 0
      %799 = vmatprep.subr.bf16.mxu0 0
      %800 = vmatpush1.bf16.msra.mxu0 0
      %801 = vmatprep.subr.bf16.mxu0 0
      %802 = vmatpush1.bf16.msra.mxu0 0
      %803 = vmatprep.subr.bf16.mxu0 0
      %804 = vmatpush1.bf16.msra.mxu0 0
      %805 = vmatprep.subr.bf16.mxu0 0
      %806 = vmatpush1.bf16.msra.mxu0 0
      %807 = vmatprep.subr.bf16.mxu0 0
      %808 = vmatpush1.bf16.msra.mxu0 0
      %809 = vmatprep.subr.bf16.mxu0 0
      %810 = vmatpush1.bf16.msra.mxu0 0
      %811 = vmatprep.subr.bf16.mxu0 0
      %812 = vmatpush1.bf16.msra.mxu0 0
      %813 = vmatprep.subr.bf16.mxu0 0
      %814 = vmatpush1.bf16.msra.mxu0 0
      %815 = vmatprep.subr.bf16.mxu0 0
      %816 = vmatpush1.bf16.msra.mxu0 0
      %817 = vmatprep.subr.bf16.mxu0 0
      %818 = vmatpush1.bf16.msra.mxu0 0
      %819 = vmatprep.subr.bf16.mxu0 0
      %820 = vmatpush1.bf16.msra.mxu0 0
      %821 = vmatprep.subr.bf16.mxu0 0
      %822 = vmatpush1.bf16.msra.mxu0 0
      %823 = vmatprep.subr.bf16.mxu0 0
      %824 = vmatpush1.bf16.msra.mxu0 0
      %825 = vmatprep.mubr.bf16.mxu0 0
      %826 = vmatmul.mubr.bf16.gmra.mrb[0].mxu0 %v785
      %v827 = vpop.f32.mrb[0].mxu0
      %v828 = vadd.f32 0.0, %v827
      %v829 = vpop.f32.mrb[0].mxu0
      %v830 = vpop.f32.mrb[0].mxu0
      %v831 = vadd.f32 0.0, %v830
      %v832 = vpop.f32.mrb[0].mxu0
      %833 = vmatprep.mubr.bf16.mxu0 0
      %834 = vmatmul.mubr.bf16.gmra.mrb[0].mxu0 %v788
      %v835 = vpop.f32.mrb[0].mxu0
      %v836 = vadd.f32 0.0, %v835
      %v837 = vpop.f32.mrb[0].mxu0
      %v838 = vpop.f32.mrb[0].mxu0
      %v839 = vadd.f32 0.0, %v838
      %v840 = vpop.f32.mrb[0].mxu0
      %841 = vdwg.mxu0
      %v842 = vadd.f32 %v765, %v828
      %v843 = vadd.f32 %v766, %v831
      %v844 = vadd.f32 %v767, %v836
      %v845 = vadd.f32 %v768, %v839
      %v846 = vld [vmem:[%s4] sm:$0xff]
      %v847 = vld [vmem:[%s4 + $0x8] sm:$0xff]
      %v848 = vld [vmem:[%s4 + $0x10] sm:$0xff]
      %v849 = vld [vmem:[%s4 + $0x18] sm:$0xff]
      %851 = vset.pattern.permute.xlu0 0
      %852 = vperm.xlu0 %851, %v846
      %v853 = vpop.permute.xlu0 %852
      %856 = vset.pattern.permute.xlu0 0
      %857 = vperm.xlu0 %856, %v847
      %v858 = vpop.permute.xlu0 %857
      %861 = vset.pattern.permute.xlu0 0
      %862 = vperm.xlu0 %861, %v848
      %v863 = vpop.permute.xlu0 %862
      %866 = vset.pattern.permute.xlu0 0
      %867 = vperm.xlu0 %866, %v849
      %v868 = vpop.permute.xlu0 %867
      %v870 = vadd.f32 %v842, %v853
      %v871 = vadd.f32 %v843, %v858
      %v872 = vadd.f32 %v844, %v863
      %v873 = vadd.f32 %v845, %v868
      %vm874 = vcmp.ge.f32.partialorder %v870, 0.0
      %vm875 = vcmp.ge.f32.partialorder %v871, 0.0
      %vm876 = vcmp.ge.f32.partialorder %v872, 0.0
      %vm877 = vcmp.ge.f32.partialorder %v873, 0.0
      %v878 = vmul.f32 %v870, 0.2
      %v879 = vmul.f32 %v871, 0.2
      %v880 = vmul.f32 %v872, 0.2
      %v881 = vmul.f32 %v873, 0.2
      %v882 = vsel %vm874, %v870, %v878
      %v883 = vsel %vm875, %v871, %v879
      %v884 = vsel %vm876, %v872, %v880
      %v885 = vsel %vm877, %v873, %v881
      %vm886 = vcmask 523264
      %887 = vst.msk [vmem:[%s283] sm:$0xff] %vm886, %v882
      %888 = vst.msk [vmem:[%s283 + $0x8] sm:$0xff] %vm886, %v883
      %889 = vst.msk [vmem:[%s283 + $0x10] sm:$0xff] %vm886, %v884
      %890 = vst.msk [vmem:[%s283 + $0x18] sm:$0xff] %vm886, %v885
      %p891 = scmp.lt.s32.totalorder %s20, 1
      %s892 = scalar_select %p891, %s20, 1
      %p893 = scmp.lt.s32.totalorder %s21, 0
      %s894 = scalar_select %p893, %s21, 0
      %s895 = smul.addr %s892, 4
      %s896 = sadd.s32 %s894, %s895
      %s897 = smul.addr %s896, 8
      %s898 = scalar_lea.vmem %s5, %s897
      // Predicated region
      $region41: #{_lambda_.2} parent=39 // pred_check
        %p899 = pneg %p167
      $region42: #{_lambda_.2} parent=39 // pred_check_branch
        %901 = sbr.rel (%p899) target = $region44
      $region43: #{_lambda_.2} parent=39 // pred_region
        _
      $region44: #{_lambda_.2} parent=39 // pred_fallthru
        _
    $region40: #{_lambda_.2} parent=5 // pred_fallthru
      _
    %p902 = scmp.le.s32.totalorder 2, %s11
    // Predicated region
    $region45: #{_lambda_.2} parent=5 // pred_check
      %p903 = pneg %p902
    $region46: #{_lambda_.2} parent=5 // pred_check_branch
      %905 = sbr.rel (%p903) target = $region48
    $region47: #{_lambda_.2} parent=5 // pred_region
      %s906 = ssub.s32 %s11, 2
      // Predicated region
      $region49: #{_lambda_.2} parent=47 // pred_check
        %p907 = pneg %p173
      $region50: #{_lambda_.2} parent=47 // pred_check_branch
        %909 = sbr.rel (%p907) target = $region52
      $region51: #{_lambda_.2} parent=47 // pred_region
        %p910 = scmp.lt.s32.totalorder %s22, 1
        %s911 = scalar_select %p910, %s22, 1
        %p912 = scmp.lt.s32.totalorder %s23, 0
        %s913 = scalar_select %p912, %s23, 0
        %s914 = smul.addr %s911, 4
        %s915 = sadd.s32 %s913, %s914
        %s916 = smul.addr %s915, 8
        %s917 = scalar_lea.vmem %s5, %s916
      $region52: #{_lambda_.2} parent=47 // pred_fallthru
        _
    $region48: #{_lambda_.2} parent=5 // pred_fallthru
      _
  $region6: #{_lambda_.2} parent=0 // loop_footer
    %s15 = sadd.s32 1, %s11
  $region7: #{_lambda_.2} parent=0 // loop_footer_branch
    %10 = sbr.rel target = $region3
  $region8: #{_lambda_.2} parent=0 // loop_exit
    _

// kernel: _lambda_.3
$region0: #{_lambda_.3}
  #allocation0 [shape = 'u32[]', space=smem, size = 0x4, offset = 0x4, fixed_abs, tag = 'smem constant byte address 0x4 - core index']
  #allocation1 [shape = 'u32[144,128]{1,0:T(1,128)}', space=vmem, size = 0x12000, scoped, tag = 'internal scratch']
  %s0 = inlined_call_operand.vmem [shape: bf16[2,8,32,64], index: 0, kind: input, shape index: {}]
  %s1 = inlined_call_operand.vmem [shape: bf16[2,32,64], index: 1, kind: input, shape index: {}]
  %s2 = inlined_call_operand.vmem [shape: bf16[32,32], index: 2, kind: input, shape index: {}]
  %s3 = inlined_call_operand.vmem [shape: bf16[32,32], index: 3, kind: input, shape index: {}]
  %s4 = inlined_call_operand.vmem [shape: f32[32,1], index: 4, kind: input, shape index: {}]
  %s5 = inlined_call_operand.hbm [shape: f32[2,32,64], index: 5, kind: output, shape index: {}]
  %s6 = sld [smem:[#allocation0]]
  $region53: #{_lambda_.3} parent=0
    _
  %s8 = ssub.s32 1, %s6
  %s9 = scalar_select 0, %s8, %s6
  $region1: #{_lambda_.3} parent=0
    #allocation2 [shape = 'u8[32768]{0}', space=vmem, size = 0x8000, scoped, tag = 'output window, operand 0']
    #allocation3 [shape = 's32[2]{0}', space=sflag, size = 0x8, scoped, tag = 'scoped memory for _lambda_.3']
    %10 = vsyncpa [#allocation3], 0
    %s11 = scalar_lea.sflag [#allocation3], 1
    %12 = vsyncpa %s11, 0
    loop: start=0, step=1, limit=4
    $region2: #{_lambda_.3} parent=1 // loop_pre_header
      _
    $region3: #{_lambda_.3} parent=1 // loop_header
      %s14 = sphi 0, %s18
      %p15 = scmp.ge.s32.totalorder %s14, 4
      %s21 = sphi 0, %s33
      %s22 = sphi 0, %s29
      %s23 = sphi 0, %s21
      %s24 = sphi 0, %s22
      %s25 = sphi 0, %s23
      %s26 = sphi 0, %s24
      %s38 = sphi 0, %s40
      %s41 = sphi 0, %s38
      %s42 = sphi 0, %s41
      %s58 = sphi 0, %s42
      %s66 = sphi 0, %s68
      %s69 = sphi 0, %s66
      %s70 = sphi 0, %s69
      %s86 = sphi 0, %s70
      %s90 = sphi 0, %s90
      %s92 = sphi 0, %s90
      %s93 = sphi 0, %s92
      %s107 = sphi 0, %s93
      %s111 = sphi 0, %s111
      %s113 = sphi 0, %s111
      %s114 = sphi 0, %s113
      %s128 = sphi 0, %s114
      %s132 = sphi 0, %s132
      %s134 = sphi 0, %s132
      %s135 = sphi 0, %s134
      %s149 = sphi 0, %s135
      %s157 = sphi 0, %s159
      %s160 = sphi 0, %s157
      %s161 = sphi 0, %s160
      %s177 = sphi 0, %s161
    $region4: #{_lambda_.3} parent=1 // loop_header_branch
      %17 = sbr.rel (%p15) target = $region8
    $region5: #{_lambda_.3} parent=1 // loop_body
      %s19 = ssub.s32 %s14, 1
      %s20 = ssub.s32 %s14, 2
      %s27 = sadd.s32 1, %s22
      %p28 = scmp.ge.s32.totalorder %s27, 1
      %s29 = scalar_select %p28, 0, %s27
      %s30 = sadd.s32 1, %s21
      %s31 = scalar_select %p28, %s30, %s21
      %p32 = scmp.ge.s32.totalorder %s31, 2
      %s33 = scalar_select %p32, 0, %s31
      %s34 = ssub.s32 %s21, %s33
      %s35 = ssub.s32 %s22, %s29
      %s36 = sor.u32 %s34, %s35
      %p37 = scmp.eq.s32.totalorder %s36, 0
      %s39 = sadd.s32 %s38, 1
      %s40 = scalar_select %p37, %s38, %s39
      %p43 = pneg %p37
      %p44 = scmp.eq.s32.totalorder %s14, 1
      %p45 = por %p43, %p44
      %p46 = scmp.ne.s32.totalorder %s38, %s41
      %p47 = scmp.eq.s32.totalorder %s14, 0
      %p48 = por %p46, %p47
      %p49 = scmp.ne.s32.totalorder %s38, %s41
      %p50 = scmp.eq.s32.totalorder %s19, 1
      %p51 = por %p49, %p50
      %p52 = scmp.ne.s32.totalorder %s41, %s42
      %p53 = scmp.eq.s32.totalorder %s19, 0
      %p54 = por %p52, %p53
      %p55 = scmp.ne.s32.totalorder %s41, %s42
      %p56 = scmp.eq.s32.totalorder %s20, 1
      %p57 = por %p55, %p56
      %p59 = scmp.ne.s32.totalorder %s42, %s58
      %p60 = scmp.eq.s32.totalorder %s20, 0
      %p61 = por %p59, %p60
      %s62 = ssub.s32 %s21, %s33
      %s63 = ssub.s32 %s22, %s29
      %s64 = sor.u32 %s62, %s63
      %p65 = scmp.eq.s32.totalorder %s64, 0
      %s67 = sadd.s32 %s66, 1
      %s68 = scalar_select %p65, %s66, %s67
      %p71 = pneg %p65
      %p72 = scmp.eq.s32.totalorder %s14, 1
      %p73 = por %p71, %p72
      %p74 = scmp.ne.s32.totalorder %s66, %s69
      %p75 = scmp.eq.s32.totalorder %s14, 0
      %p76 = por %p74, %p75
      %p77 = scmp.ne.s32.totalorder %s66, %s69
      %p78 = scmp.eq.s32.totalorder %s19, 1
      %p79 = por %p77, %p78
      %p80 = scmp.ne.s32.totalorder %s69, %s70
      %p81 = scmp.eq.s32.totalorder %s19, 0
      %p82 = por %p80, %p81
      %p83 = scmp.ne.s32.totalorder %s69, %s70
      %p84 = scmp.eq.s32.totalorder %s20, 1
      %p85 = por %p83, %p84
      %p87 = scmp.ne.s32.totalorder %s70, %s86
      %p88 = scmp.eq.s32.totalorder %s20, 0
      %p89 = por %p87, %p88
      %s91 = sadd.s32 %s90, 1
      %p94 = scmp.eq.s32.totalorder %s14, 1
      %p95 = scmp.ne.s32.totalorder %s90, %s92
      %p96 = scmp.eq.s32.totalorder %s14, 0
      %p97 = por %p95, %p96
      %p98 = scmp.ne.s32.totalorder %s90, %s92
      %p99 = scmp.eq.s32.totalorder %s19, 1
      %p100 = por %p98, %p99
      %p101 = scmp.ne.s32.totalorder %s92, %s93
      %p102 = scmp.eq.s32.totalorder %s19, 0
      %p103 = por %p101, %p102
      %p104 = scmp.ne.s32.totalorder %s92, %s93
      %p105 = scmp.eq.s32.totalorder %s20, 1
      %p106 = por %p104, %p105
      %p108 = scmp.ne.s32.totalorder %s93, %s107
      %p109 = scmp.eq.s32.totalorder %s20, 0
      %p110 = por %p108, %p109
      %s112 = sadd.s32 %s111, 1
      %p115 = scmp.eq.s32.totalorder %s14, 1
      %p116 = scmp.ne.s32.totalorder %s111, %s113
      %p117 = scmp.eq.s32.totalorder %s14, 0
      %p118 = por %p116, %p117
      %p119 = scmp.ne.s32.totalorder %s111, %s113
      %p120 = scmp.eq.s32.totalorder %s19, 1
      %p121 = por %p119, %p120
      %p122 = scmp.ne.s32.totalorder %s113, %s114
      %p123 = scmp.eq.s32.totalorder %s19, 0
      %p124 = por %p122, %p123
      %p125 = scmp.ne.s32.totalorder %s113, %s114
      %p126 = scmp.eq.s32.totalorder %s20, 1
      %p127 = por %p125, %p126
      %p129 = scmp.ne.s32.totalorder %s114, %s128
      %p130 = scmp.eq.s32.totalorder %s20, 0
      %p131 = por %p129, %p130
      %s133 = sadd.s32 %s132, 1
      %p136 = scmp.eq.s32.totalorder %s14, 1
      %p137 = scmp.ne.s32.totalorder %s132, %s134
      %p138 = scmp.eq.s32.totalorder %s14, 0
      %p139 = por %p137, %p138
      %p140 = scmp.ne.s32.totalorder %s132, %s134
      %p141 = scmp.eq.s32.totalorder %s19, 1
      %p142 = por %p140, %p141
      %p143 = scmp.ne.s32.totalorder %s134, %s135
      %p144 = scmp.eq.s32.totalorder %s19, 0
      %p145 = por %p143, %p144
      %p146 = scmp.ne.s32.totalorder %s134, %s135
      %p147 = scmp.eq.s32.totalorder %s20, 1
      %p148 = por %p146, %p147
      %p150 = scmp.ne.s32.totalorder %s135, %s149
      %p151 = scmp.eq.s32.totalorder %s20, 0
      %p152 = por %p150, %p151
      %s153 = ssub.s32 %s21, %s33
      %s154 = ssub.s32 %s22, %s29
      %s155 = sor.u32 %s153, %s154
      %p156 = scmp.eq.s32.totalorder %s155, 0
      %s158 = sadd.s32 %s157, 1
      %s159 = scalar_select %p156, %s157, %s158
      %p162 = pneg %p156
      %p163 = scmp.eq.s32.totalorder %s14, 1
      %p164 = por %p162, %p163
      %p165 = scmp.ne.s32.totalorder %s157, %s160
      %p166 = scmp.eq.s32.totalorder %s14, 0
      %p167 = por %p165, %p166
      %p168 = scmp.ne.s32.totalorder %s157, %s160
      %p169 = scmp.eq.s32.totalorder %s19, 1
      %p170 = por %p168, %p169
      %p171 = scmp.ne.s32.totalorder %s160, %s161
      %p172 = scmp.eq.s32.totalorder %s19, 0
      %p173 = por %p171, %p172
      %p174 = scmp.ne.s32.totalorder %s160, %s161
      %p175 = scmp.eq.s32.totalorder %s20, 1
      %p176 = por %p174, %p175
      %p178 = scmp.ne.s32.totalorder %s161, %s177
      %p179 = scmp.eq.s32.totalorder %s20, 0
      %p180 = por %p178, %p179
      %p181 = scmp.le.s32.totalorder 1, %s14
      %p182 = scmp.lt.s32.totalorder %s14, 3
      %p183 = pnand %p181, %p182
      %p184 = pneg %p183
      // Predicated region
      $region9: #{_lambda_.3} parent=5 // pred_check
        _
      $region10: #{_lambda_.3} parent=5 // pred_check_branch
        %186 = sbr.rel (%p183) target = $region12
      $region11: #{_lambda_.3} parent=5 // pred_region
        %s187 = ssub.s32 %s14, 1
        // Predicated region
        $region13: #{_lambda_.3} parent=11 // pred_check
          %p188 = pneg %p103
        $region14: #{_lambda_.3} parent=11 // pred_check_branch
          %190 = sbr.rel (%p188) target = $region16
        $region15: #{_lambda_.3} parent=11 // pred_region
          _
        $region16: #{_lambda_.3} parent=11 // pred_fallthru
          _
        // Predicated region
        $region17: #{_lambda_.3} parent=11 // pred_check
          %p191 = pneg %p124
        $region18: #{_lambda_.3} parent=11 // pred_check_branch
          %193 = sbr.rel (%p191) target = $region20
        $region19: #{_lambda_.3} parent=11 // pred_region
          _
        $region20: #{_lambda_.3} parent=11 // pred_fallthru
          _
        // Predicated region
        $region21: #{_lambda_.3} parent=11 // pred_check
          %p194 = pneg %p145
        $region22: #{_lambda_.3} parent=11 // pred_check_branch
          %196 = sbr.rel (%p194) target = $region24
        $region23: #{_lambda_.3} parent=11 // pred_region
          _
        $region24: #{_lambda_.3} parent=11 // pred_fallthru
          _
      $region12: #{_lambda_.3} parent=5 // pred_fallthru
        _
      %p197 = scmp.lt.s32.totalorder %s14, 2
      // Predicated region
      $region25: #{_lambda_.3} parent=5 // pred_check
        %p198 = pneg %p197
      $region26: #{_lambda_.3} parent=5 // pred_check_branch
        %200 = sbr.rel (%p198) target = $region28
      $region27: #{_lambda_.3} parent=5 // pred_region
        // Predicated region
        $region29: #{_lambda_.3} parent=27 // pred_check
          %p201 = pneg %p48
        $region30: #{_lambda_.3} parent=27 // pred_check_branch
          %203 = sbr.rel (%p201) target = $region32
        $region31: #{_lambda_.3} parent=27 // pred_region
          %p204 = scmp.lt.s32.totalorder %s21, 1
          %s205 = scalar_select %p204, %s21, 1
          %p206 = scmp.lt.s32.totalorder %s22, 0
          %s207 = scalar_select %p206, %s22, 0
          %s208 = smul.addr %s205, 32
          %s209 = sadd.s32 %s207, %s208
          %s210 = smul.addr %s209, 4
          %s211 = scalar_lea.vmem %s0, %s210
        $region32: #{_lambda_.3} parent=27 // pred_fallthru
          _
        // Predicated region
        $region33: #{_lambda_.3} parent=27 // pred_check
          %p212 = pneg %p76
        $region34: #{_lambda_.3} parent=27 // pred_check_branch
          %214 = sbr.rel (%p212) target = $region36
        $region35: #{_lambda_.3} parent=27 // pred_region
          %p215 = scmp.lt.s32.totalorder %s21, 1
          %s216 = scalar_select %p215, %s21, 1
          %p217 = scmp.lt.s32.totalorder %s22, 0
          %s218 = scalar_select %p217, %s22, 0
          %s219 = smul.addr %s216, 4
          %s220 = sadd.s32 %s218, %s219
          %s221 = smul.addr %s220, 4
          %s222 = scalar_lea.vmem %s1, %s221
        $region36: #{_lambda_.3} parent=27 // pred_fallthru
          _
      $region28: #{_lambda_.3} parent=5 // pred_fallthru
        _
      %p223 = scmp.le.s32.totalorder 1, %s14
      %p224 = scmp.lt.s32.totalorder %s14, 3
      %p225 = pnand %p223, %p224
      %p226 = pneg %p225
      // Predicated region
      $region37: #{_lambda_.3} parent=5 // pred_check
        _
      $region38: #{_lambda_.3} parent=5 // pred_check_branch
        %228 = sbr.rel (%p225) target = $region40
      $region39: #{_lambda_.3} parent=5 // pred_region
        %s229 = ssub.s32 %s14, 1
        %p230 = scmp.lt.s32.totalorder %s23, 1
        %s231 = scalar_select %p230, %s23, 1
        %p232 = scmp.lt.s32.totalorder %s24, 0
        %s233 = scalar_select %p232, %s24, 0
        %s234 = smul.addr %s231, 32
        %s235 = sadd.s32 %s233, %s234
        %s236 = smul.addr %s235, 4
        %s237 = scalar_lea.vmem %s0, %s236
        %p238 = pneg %p54
        %p239 = pneg %p51
        %p240 = scmp.lt.s32.totalorder %s23, 1
        %s241 = scalar_select %p240, %s23, 1
        %p242 = scmp.lt.s32.totalorder %s24, 0
        %s243 = scalar_select %p242, %s24, 0
        %s244 = smul.addr %s241, 4
        %s245 = sadd.s32 %s243, %s244
        %s246 = smul.addr %s245, 4
        %s247 = scalar_lea.vmem %s1, %s246
        %p248 = pneg %p82
        %p249 = pneg %p79
        %p250 = pneg %p103
        %p251 = pneg %p100
        %p252 = pneg %p124
        %p253 = pneg %p121
        %p254 = pneg %p145
        %p255 = pneg %p142
        %p256 = pneg %p173
        %p257 = pneg %p170
        %s258 = sand.u32 %s160, 1
        %s259 = scalar_lea.sflag [#allocation3], %s258
        %s260 = sand.u32 %s160, 1
        %s261 = smul.addr %s260, 32
        %s262 = scalar_lea.vmem [#allocation2], %s261
        %p263 = scmp.lt.s32.totalorder %s23, 1
        %s264 = scalar_select %p263, %s23, 1
        %p265 = scmp.lt.s32.totalorder %s24, 0
        %s266 = scalar_select %p265, %s24, 0
        %s267 = smul.addr %s264, 32
        %s268 = sadd.s32 %s266, %s267
        %s269 = smul.addr %s268, 4
        %s270 = scalar_lea.vmem %s0, %s269
        %p271 = scmp.lt.s32.totalorder %s23, 1
        %s272 = scalar_select %p271, %s23, 1
        %p273 = scmp.lt.s32.totalorder %s24, 0
        %s274 = scalar_select %p273, %s24, 0
        %s275 = smul.addr %s272, 4
        %s276 = sadd.s32 %s274, %s275
        %s277 = smul.addr %s276, 4
        %s278 = scalar_lea.vmem %s1, %s277
        %v280 = vld [vmem:[%s2] sm:$0xf]
        %v281 = vld [vmem:[%s2 + $0x4] sm:$0xf]
        %v282 = vld [vmem:[%s2 + $0x8] sm:$0xf]
        %v283 = vld [vmem:[%s2 + $0xc] sm:$0xf]
        %v284 = vld [vmem:[%s270] sm:$0xf]
        %v285 = vld [vmem:[%s270 + $0x4] sm:$0xf]
        %v286 = vld [vmem:[%s270 + $0x8] sm:$0xf]
        %v287 = vld [vmem:[%s270 + $0xc] sm:$0xf]
        %v292 = vunpack.c.l.b16 %v280
        %v293 = vunpack.c.l.b16 %v281
        %v294 = vunpack.c.l.b16 %v282
        %v295 = vunpack.c.l.b16 %v283
        %v296 = vpack.c.b16 %v293, %v292
        %v297 = vpack.c.b16 %v295, %v294
        %v302 = vunpack.c.l.b16 %v284
        %v303 = vunpack.c.l.b16 %v285
        %v304 = vunpack.c.l.b16 %v286
        %v305 = vunpack.c.l.b16 %v287
        %v306 = vpack.c.b16 %v303, %v302
        %v307 = vpack.c.b16 %v305, %v304
        %vm310 = vcmask 261120
        %v312 = vsel %vm310, %v296, 0
        %v315 = vsel %vm310, %v297, 0
        %317 = vmatprep.subr.bf16.mxu0 0
        %318 = vmatpush1.bf16.msra.mxu0 %v306
        %319 = vmatprep.subr.bf16.mxu0 0
        %320 = vmatpush1.bf16.msra.mxu0 %v307
        %321 = vmatprep.subr.bf16.mxu0 0
        %322 = vmatpush1.bf16.msra.mxu0 0
        %323 = vmatprep.subr.bf16.mxu0 0
        %324 = vmatpush1.bf16.msra.mxu0 0
        %325 = vmatprep.subr.bf16.mxu0 0
        %326 = vmatpush1.bf16.msra.mxu0 0
        %327 = vmatprep.subr.bf16.mxu0 0
        %328 = vmatpush1.bf16.msra.mxu0 0
        %329 = vmatprep.subr.bf16.mxu0 0
        %330 = vmatpush1.bf16.msra.mxu0 0
        %331 = vmatprep.subr.bf16.mxu0 0
        %332 = vmatpush1.bf16.msra.mxu0 0
        %333 = vmatprep.subr.bf16.mxu0 0
        %334 = vmatpush1.bf16.msra.mxu0 0
        %335 = vmatprep.subr.bf16.mxu0 0
        %336 = vmatpush1.bf16.msra.mxu0 0
        %337 = vmatprep.subr.bf16.mxu0 0
        %338 = vmatpush1.bf16.msra.mxu0 0
        %339 = vmatprep.subr.bf16.mxu0 0
        %340 = vmatpush1.bf16.msra.mxu0 0
        %341 = vmatprep.subr.bf16.mxu0 0
        %342 = vmatpush1.bf16.msra.mxu0 0
        %343 = vmatprep.subr.bf16.mxu0 0
        %344 = vmatpush1.bf16.msra.mxu0 0
        %345 = vmatprep.subr.bf16.mxu0 0
        %346 = vmatpush1.bf16.msra.mxu0 0
        %347 = vmatprep.subr.bf16.mxu0 0
        %348 = vmatpush1.bf16.msra.mxu0 0
        %349 = vmatprep.mubr.bf16.mxu0 0
        %350 = vmatmul.mubr.bf16.gmra.mrb[0].mxu0 %v312
        %v351 = vpop.f32.mrb[0].mxu0
        %v352 = vadd.f32 0.0, %v351
        %v353 = vpop.f32.mrb[0].mxu0
        %v354 = vpop.f32.mrb[0].mxu0
        %v355 = vadd.f32 0.0, %v354
        %v356 = vpop.f32.mrb[0].mxu0
        %357 = vmatprep.mubr.bf16.mxu0 0
        %358 = vmatmul.mubr.bf16.gmra.mrb[0].mxu0 %v315
        %v359 = vpop.f32.mrb[0].mxu0
        %v360 = vadd.f32 0.0, %v359
        %v361 = vpop.f32.mrb[0].mxu0
        %v362 = vpop.f32.mrb[0].mxu0
        %v363 = vadd.f32 0.0, %v362
        %v364 = vpop.f32.mrb[0].mxu0
        %365 = vdwg.mxu0
        %s366 = scalar_lea.vmem %s270, 16
        %v367 = vld [vmem:[%s366] sm:$0xf]
        %v368 = vld [vmem:[%s366 + $0x4] sm:$0xf]
        %v369 = vld [vmem:[%s366 + $0x8] sm:$0xf]
        %v370 = vld [vmem:[%s366 + $0xc] sm:$0xf]
        %v375 = vunpack.c.l.b16 %v367
        %v376 = vunpack.c.l.b16 %v368
        %v377 = vunpack.c.l.b16 %v369
        %v378 = vunpack.c.l.b16 %v370
        %v379 = vpack.c.b16 %v376, %v375
        %v380 = vpack.c.b16 %v378, %v377
        %383 = vmatprep.subr.bf16.mxu0 0
        %384 = vmatpush1.bf16.msra.mxu0 %v379
        %385 = vmatprep.subr.bf16.mxu0 0
        %386 = vmatpush1.bf16.msra.mxu0 %v380
        %387 = vmatprep.subr.bf16.mxu0 0
        %388 = vmatpush1.bf16.msra.mxu0 0
        %389 = vmatprep.subr.bf16.mxu0 0
        %390 = vmatpush1.bf16.msra.mxu0 0
        %391 = vmatprep.subr.bf16.mxu0 0
        %392 = vmatpush1.bf16.msra.mxu0 0
        %393 = vmatprep.subr.bf16.mxu0 0
        %394 = vmatpush1.bf16.msra.mxu0 0
        %395 = vmatprep.subr.bf16.mxu0 0
        %396 = vmatpush1.bf16.msra.mxu0 0
        %397 = vmatprep.subr.bf16.mxu0 0
        %398 = vmatpush1.bf16.msra.mxu0 0
        %399 = vmatprep.subr.bf16.mxu0 0
        %400 = vmatpush1.bf16.msra.mxu0 0
        %401 = vmatprep.subr.bf16.mxu0 0
        %402 = vmatpush1.bf16.msra.mxu0 0
        %403 = vmatprep.subr.bf16.mxu0 0
        %404 = vmatpush1.bf16.msra.mxu0 0
        %405 = vmatprep.subr.bf16.mxu0 0
        %406 = vmatpush1.bf16.msra.mxu0 0
        %407 = vmatprep.subr.bf16.mxu0 0
        %408 = vmatpush1.bf16.msra.mxu0 0
        %409 = vmatprep.subr.bf16.mxu0 0
        %410 = vmatpush1.bf16.msra.mxu0 0
        %411 = vmatprep.subr.bf16.mxu0 0
        %412 = vmatpush1.bf16.msra.mxu0 0
        %413 = vmatprep.subr.bf16.mxu0 0
        %414 = vmatpush1.bf16.msra.mxu0 0
        %415 = vmatprep.mubr.bf16.mxu0 0
        %416 = vmatmul.mubr.bf16.gmra.mrb[0].mxu0 %v312
        %v417 = vpop.f32.mrb[0].mxu0
        %v418 = vadd.f32 0.0, %v417
        %v419 = vpop.f32.mrb[0].mxu0
        %v420 = vpop.f32.mrb[0].mxu0
        %v421 = vadd.f32 0.0, %v420
        %v422 = vpop.f32.mrb[0].mxu0
        %423 = vmatprep.mubr.bf16.mxu0 0
        %424 = vmatmul.mubr.bf16.gmra.mrb[0].mxu0 %v315
        %v425 = vpop.f32.mrb[0].mxu0
        %v426 = vadd.f32 0.0, %v425
        %v427 = vpop.f32.mrb[0].mxu0
        %v428 = vpop.f32.mrb[0].mxu0
        %v429 = vadd.f32 0.0, %v428
        %v430 = vpop.f32.mrb[0].mxu0
        %431 = vdwg.mxu0
        %v432 = vmax.f32 %v352, %v418
        %v433 = vmax.f32 %v355, %v421
        %v434 = vmax.f32 %v360, %v426
        %v435 = vmax.f32 %v363, %v429
        %s436 = scalar_lea.vmem %s270, 32
        %v437 = vld [vmem:[%s436] sm:$0xf]
        %v438 = vld [vmem:[%s436 + $0x4] sm:$0xf]
        %v439 = vld [vmem:[%s436 + $0x8] sm:$0xf]
        %v440 = vld [vmem:[%s436 + $0xc] sm:$0xf]
        %v445 = vunpack.c.l.b16 %v437
        %v446 = vunpack.c.l.b16 %v438
        %v447 = vunpack.c.l.b16 %v439
        %v448 = vunpack.c.l.b16 %v440
        %v449 = vpack.c.b16 %v446, %v445
        %v450 = vpack.c.b16 %v448, %v447
        %453 = vmatprep.subr.bf16.mxu0 0
        %454 = vmatpush1.bf16.msra.mxu0 %v449
        %455 = vmatprep.subr.bf16.mxu0 0
        %456 = vmatpush1.bf16.msra.mxu0 %v450
        %457 = vmatprep.subr.bf16.mxu0 0
        %458 = vmatpush1.bf16.msra.mxu0 0
        %459 = vmatprep.subr.bf16.mxu0 0
        %460 = vmatpush1.bf16.msra.mxu0 0
        %461 = vmatprep.subr.bf16.mxu0 0
        %462 = vmatpush1.bf16.msra.mxu0 0
        %463 = vmatprep.subr.bf16.mxu0 0
        %464 = vmatpush1.bf16.msra.mxu0 0
        %465 = vmatprep.subr.bf16.mxu0 0
        %466 = vmatpush1.bf16.msra.mxu0 0
        %467 = vmatprep.subr.bf16.mxu0 0
        %468 = vmatpush1.bf16.msra.mxu0 0
        %469 = vmatprep.subr.bf16.mxu0 0
        %470 = vmatpush1.bf16.msra.mxu0 0
        %471 = vmatprep.subr.bf16.mxu0 0
        %472 = vmatpush1.bf16.msra.mxu0 0
        %473 = vmatprep.subr.bf16.mxu0 0
        %474 = vmatpush1.bf16.msra.mxu0 0
        %475 = vmatprep.subr.bf16.mxu0 0
        %476 = vmatpush1.bf16.msra.mxu0 0
        %477 = vmatprep.subr.bf16.mxu0 0
        %478 = vmatpush1.bf16.msra.mxu0 0
        %479 = vmatprep.subr.bf16.mxu0 0
        %480 = vmatpush1.bf16.msra.mxu0 0
        %481 = vmatprep.subr.bf16.mxu0 0
        %482 = vmatpush1.bf16.msra.mxu0 0
        %483 = vmatprep.subr.bf16.mxu0 0
        %484 = vmatpush1.bf16.msra.mxu0 0
        %485 = vmatprep.mubr.bf16.mxu0 0
        %486 = vmatmul.mubr.bf16.gmra.mrb[0].mxu0 %v312
        %v487 = vpop.f32.mrb[0].mxu0
        %v488 = vadd.f32 0.0, %v487
        %v489 = vpop.f32.mrb[0].mxu0
        %v490 = vpop.f32.mrb[0].mxu0
        %v491 = vadd.f32 0.0, %v490
        %v492 = vpop.f32.mrb[0].mxu0
        %493 = vmatprep.mubr.bf16.mxu0 0
        %494 = vmatmul.mubr.bf16.gmra.mrb[0].mxu0 %v315
        %v495 = vpop.f32.mrb[0].mxu0
        %v496 = vadd.f32 0.0, %v495
        %v497 = vpop.f32.mrb[0].mxu0
        %v498 = vpop.f32.mrb[0].mxu0
        %v499 = vadd.f32 0.0, %v498
        %v500 = vpop.f32.mrb[0].mxu0
        %501 = vdwg.mxu0
        %v502 = vmax.f32 %v432, %v488
        %v503 = vmax.f32 %v433, %v491
        %v504 = vmax.f32 %v434, %v496
        %v505 = vmax.f32 %v435, %v499
        %s506 = scalar_lea.vmem %s270, 48
        %v507 = vld [vmem:[%s506] sm:$0xf]
        %v508 = vld [vmem:[%s506 + $0x4] sm:$0xf]
        %v509 = vld [vmem:[%s506 + $0x8] sm:$0xf]
        %v510 = vld [vmem:[%s506 + $0xc] sm:$0xf]
        %v515 = vunpack.c.l.b16 %v507
        %v516 = vunpack.c.l.b16 %v508
        %v517 = vunpack.c.l.b16 %v509
        %v518 = vunpack.c.l.b16 %v510
        %v519 = vpack.c.b16 %v516, %v515
        %v520 = vpack.c.b16 %v518, %v517
        %523 = vmatprep.subr.bf16.mxu0 0
        %524 = vmatpush1.bf16.msra.mxu0 %v519
        %525 = vmatprep.subr.bf16.mxu0 0
        %526 = vmatpush1.bf16.msra.mxu0 %v520
        %527 = vmatprep.subr.bf16.mxu0 0
        %528 = vmatpush1.bf16.msra.mxu0 0
        %529 = vmatprep.subr.bf16.mxu0 0
        %530 = vmatpush1.bf16.msra.mxu0 0
        %531 = vmatprep.subr.bf16.mxu0 0
        %532 = vmatpush1.bf16.msra.mxu0 0
        %533 = vmatprep.subr.bf16.mxu0 0
        %534 = vmatpush1.bf16.msra.mxu0 0
        %535 = vmatprep.subr.bf16.mxu0 0
        %536 = vmatpush1.bf16.msra.mxu0 0
        %537 = vmatprep.subr.bf16.mxu0 0
        %538 = vmatpush1.bf16.msra.mxu0 0
        %539 = vmatprep.subr.bf16.mxu0 0
        %540 = vmatpush1.bf16.msra.mxu0 0
        %541 = vmatprep.subr.bf16.mxu0 0
        %542 = vmatpush1.bf16.msra.mxu0 0
        %543 = vmatprep.subr.bf16.mxu0 0
        %544 = vmatpush1.bf16.msra.mxu0 0
        %545 = vmatprep.subr.bf16.mxu0 0
        %546 = vmatpush1.bf16.msra.mxu0 0
        %547 = vmatprep.subr.bf16.mxu0 0
        %548 = vmatpush1.bf16.msra.mxu0 0
        %549 = vmatprep.subr.bf16.mxu0 0
        %550 = vmatpush1.bf16.msra.mxu0 0
        %551 = vmatprep.subr.bf16.mxu0 0
        %552 = vmatpush1.bf16.msra.mxu0 0
        %553 = vmatprep.subr.bf16.mxu0 0
        %554 = vmatpush1.bf16.msra.mxu0 0
        %555 = vmatprep.mubr.bf16.mxu0 0
        %556 = vmatmul.mubr.bf16.gmra.mrb[0].mxu0 %v312
        %v557 = vpop.f32.mrb[0].mxu0
        %v558 = vadd.f32 0.0, %v557
        %v559 = vpop.f32.mrb[0].mxu0
        %v560 = vpop.f32.mrb[0].mxu0
        %v561 = vadd.f32 0.0, %v560
        %v562 = vpop.f32.mrb[0].mxu0
        %563 = vmatprep.mubr.bf16.mxu0 0
        %564 = vmatmul.mubr.bf16.gmra.mrb[0].mxu0 %v315
        %v565 = vpop.f32.mrb[0].mxu0
        %v566 = vadd.f32 0.0, %v565
        %v567 = vpop.f32.mrb[0].mxu0
        %v568 = vpop.f32.mrb[0].mxu0
        %v569 = vadd.f32 0.0, %v568
        %v570 = vpop.f32.mrb[0].mxu0
        %571 = vdwg.mxu0
        %v572 = vmax.f32 %v502, %v558
        %v573 = vmax.f32 %v503, %v561
        %v574 = vmax.f32 %v504, %v566
        %v575 = vmax.f32 %v505, %v569
        %s576 = scalar_lea.vmem %s270, 64
        %v577 = vld [vmem:[%s576] sm:$0xf]
        %v578 = vld [vmem:[%s576 + $0x4] sm:$0xf]
        %v579 = vld [vmem:[%s576 + $0x8] sm:$0xf]
        %v580 = vld [vmem:[%s576 + $0xc] sm:$0xf]
        %v585 = vunpack.c.l.b16 %v577
        %v586 = vunpack.c.l.b16 %v578
        %v587 = vunpack.c.l.b16 %v579
        %v588 = vunpack.c.l.b16 %v580
        %v589 = vpack.c.b16 %v586, %v585
        %v590 = vpack.c.b16 %v588, %v587
        %593 = vmatprep.subr.bf16.mxu0 0
        %594 = vmatpush1.bf16.msra.mxu0 %v589
        %595 = vmatprep.subr.bf16.mxu0 0
        %596 = vmatpush1.bf16.msra.mxu0 %v590
        %597 = vmatprep.subr.bf16.mxu0 0
        %598 = vmatpush1.bf16.msra.mxu0 0
        %599 = vmatprep.subr.bf16.mxu0 0
        %600 = vmatpush1.bf16.msra.mxu0 0
        %601 = vmatprep.subr.bf16.mxu0 0
        %602 = vmatpush1.bf16.msra.mxu0 0
        %603 = vmatprep.subr.bf16.mxu0 0
        %604 = vmatpush1.bf16.msra.mxu0 0
        %605 = vmatprep.subr.bf16.mxu0 0
        %606 = vmatpush1.bf16.msra.mxu0 0
        %607 = vmatprep.subr.bf16.mxu0 0
        %608 = vmatpush1.bf16.msra.mxu0 0
        %609 = vmatprep.subr.bf16.mxu0 0
        %610 = vmatpush1.bf16.msra.mxu0 0
        %611 = vmatprep.subr.bf16.mxu0 0
        %612 = vmatpush1.bf16.msra.mxu0 0
        %613 = vmatprep.subr.bf16.mxu0 0
        %614 = vmatpush1.bf16.msra.mxu0 0
        %615 = vmatprep.subr.bf16.mxu0 0
        %616 = vmatpush1.bf16.msra.mxu0 0
        %617 = vmatprep.subr.bf16.mxu0 0
        %618 = vmatpush1.bf16.msra.mxu0 0
        %619 = vmatprep.subr.bf16.mxu0 0
        %620 = vmatpush1.bf16.msra.mxu0 0
        %621 = vmatprep.subr.bf16.mxu0 0
        %622 = vmatpush1.bf16.msra.mxu0 0
        %623 = vmatprep.subr.bf16.mxu0 0
        %624 = vmatpush1.bf16.msra.mxu0 0
        %625 = vmatprep.mubr.bf16.mxu0 0
        %626 = vmatmul.mubr.bf16.gmra.mrb[0].mxu0 %v312
        %v627 = vpop.f32.mrb[0].mxu0
        %v628 = vadd.f32 0.0, %v627
        %v629 = vpop.f32.mrb[0].mxu0
        %v630 = vpop.f32.mrb[0].mxu0
        %v631 = vadd.f32 0.0, %v630
        %v632 = vpop.f32.mrb[0].mxu0
        %633 = vmatprep.mubr.bf16.mxu0 0
        %634 = vmatmul.mubr.bf16.gmra.mrb[0].mxu0 %v315
        %v635 = vpop.f32.mrb[0].mxu0
        %v636 = vadd.f32 0.0, %v635
        %v637 = vpop.f32.mrb[0].mxu0
        %v638 = vpop.f32.mrb[0].mxu0
        %v639 = vadd.f32 0.0, %v638
        %v640 = vpop.f32.mrb[0].mxu0
        %641 = vdwg.mxu0
        %v642 = vmax.f32 %v572, %v628
        %v643 = vmax.f32 %v573, %v631
        %v644 = vmax.f32 %v574, %v636
        %v645 = vmax.f32 %v575, %v639
        %s646 = scalar_lea.vmem %s270, 80
        %v647 = vld [vmem:[%s646] sm:$0xf]
        %v648 = vld [vmem:[%s646 + $0x4] sm:$0xf]
        %v649 = vld [vmem:[%s646 + $0x8] sm:$0xf]
        %v650 = vld [vmem:[%s646 + $0xc] sm:$0xf]
        %v655 = vunpack.c.l.b16 %v647
        %v656 = vunpack.c.l.b16 %v648
        %v657 = vunpack.c.l.b16 %v649
        %v658 = vunpack.c.l.b16 %v650
        %v659 = vpack.c.b16 %v656, %v655
        %v660 = vpack.c.b16 %v658, %v657
        %663 = vmatprep.subr.bf16.mxu0 0
        %664 = vmatpush1.bf16.msra.mxu0 %v659
        %665 = vmatprep.subr.bf16.mxu0 0
        %666 = vmatpush1.bf16.msra.mxu0 %v660
        %667 = vmatprep.subr.bf16.mxu0 0
        %668 = vmatpush1.bf16.msra.mxu0 0
        %669 = vmatprep.subr.bf16.mxu0 0
        %670 = vmatpush1.bf16.msra.mxu0 0
        %671 = vmatprep.subr.bf16.mxu0 0
        %672 = vmatpush1.bf16.msra.mxu0 0
        %673 = vmatprep.subr.bf16.mxu0 0
        %674 = vmatpush1.bf16.msra.mxu0 0
        %675 = vmatprep.subr.bf16.mxu0 0
        %676 = vmatpush1.bf16.msra.mxu0 0
        %677 = vmatprep.subr.bf16.mxu0 0
        %678 = vmatpush1.bf16.msra.mxu0 0
        %679 = vmatprep.subr.bf16.mxu0 0
        %680 = vmatpush1.bf16.msra.mxu0 0
        %681 = vmatprep.subr.bf16.mxu0 0
        %682 = vmatpush1.bf16.msra.mxu0 0
        %683 = vmatprep.subr.bf16.mxu0 0
        %684 = vmatpush1.bf16.msra.mxu0 0
        %685 = vmatprep.subr.bf16.mxu0 0
        %686 = vmatpush1.bf16.msra.mxu0 0
        %687 = vmatprep.subr.bf16.mxu0 0
        %688 = vmatpush1.bf16.msra.mxu0 0
        %689 = vmatprep.subr.bf16.mxu0 0
        %690 = vmatpush1.bf16.msra.mxu0 0
        %691 = vmatprep.subr.bf16.mxu0 0
        %692 = vmatpush1.bf16.msra.mxu0 0
        %693 = vmatprep.subr.bf16.mxu0 0
        %694 = vmatpush1.bf16.msra.mxu0 0
        %695 = vmatprep.mubr.bf16.mxu0 0
        %696 = vmatmul.mubr.bf16.gmra.mrb[0].mxu0 %v312
        %v697 = vpop.f32.mrb[0].mxu0
        %v698 = vadd.f32 0.0, %v697
        %v699 = vpop.f32.mrb[0].mxu0
        %v700 = vpop.f32.mrb[0].mxu0
        %v701 = vadd.f32 0.0, %v700
        %v702 = vpop.f32.mrb[0].mxu0
        %703 = vmatprep.mubr.bf16.mxu0 0
        %704 = vmatmul.mubr.bf16.gmra.mrb[0].mxu0 %v315
        %v705 = vpop.f32.mrb[0].mxu0
        %v706 = vadd.f32 0.0, %v705
        %v707 = vpop.f32.mrb[0].mxu0
        %v708 = vpop.f32.mrb[0].mxu0
        %v709 = vadd.f32 0.0, %v708
        %v710 = vpop.f32.mrb[0].mxu0
        %711 = vdwg.mxu0
        %v712 = vmax.f32 %v642, %v698
        %v713 = vmax.f32 %v643, %v701
        %v714 = vmax.f32 %v644, %v706
        %v715 = vmax.f32 %v645, %v709
        %s716 = scalar_lea.vmem %s270, 96
        %v717 = vld [vmem:[%s716] sm:$0xf]
        %v718 = vld [vmem:[%s716 + $0x4] sm:$0xf]
        %v719 = vld [vmem:[%s716 + $0x8] sm:$0xf]
        %v720 = vld [vmem:[%s716 + $0xc] sm:$0xf]
        %v725 = vunpack.c.l.b16 %v717
        %v726 = vunpack.c.l.b16 %v718
        %v727 = vunpack.c.l.b16 %v719
        %v728 = vunpack.c.l.b16 %v720
        %v729 = vpack.c.b16 %v726, %v725
        %v730 = vpack.c.b16 %v728, %v727
        %733 = vmatprep.subr.bf16.mxu0 0
        %734 = vmatpush1.bf16.msra.mxu0 %v729
        %735 = vmatprep.subr.bf16.mxu0 0
        %736 = vmatpush1.bf16.msra.mxu0 %v730
        %737 = vmatprep.subr.bf16.mxu0 0
        %738 = vmatpush1.bf16.msra.mxu0 0
        %739 = vmatprep.subr.bf16.mxu0 0
        %740 = vmatpush1.bf16.msra.mxu0 0
        %741 = vmatprep.subr.bf16.mxu0 0
        %742 = vmatpush1.bf16.msra.mxu0 0
        %743 = vmatprep.subr.bf16.mxu0 0
        %744 = vmatpush1.bf16.msra.mxu0 0
        %745 = vmatprep.subr.bf16.mxu0 0
        %746 = vmatpush1.bf16.msra.mxu0 0
        %747 = vmatprep.subr.bf16.mxu0 0
        %748 = vmatpush1.bf16.msra.mxu0 0
        %749 = vmatprep.subr.bf16.mxu0 0
        %750 = vmatpush1.bf16.msra.mxu0 0
        %751 = vmatprep.subr.bf16.mxu0 0
        %752 = vmatpush1.bf16.msra.mxu0 0
        %753 = vmatprep.subr.bf16.mxu0 0
        %754 = vmatpush1.bf16.msra.mxu0 0
        %755 = vmatprep.subr.bf16.mxu0 0
        %756 = vmatpush1.bf16.msra.mxu0 0
        %757 = vmatprep.subr.bf16.mxu0 0
        %758 = vmatpush1.bf16.msra.mxu0 0
        %759 = vmatprep.subr.bf16.mxu0 0
        %760 = vmatpush1.bf16.msra.mxu0 0
        %761 = vmatprep.subr.bf16.mxu0 0
        %762 = vmatpush1.bf16.msra.mxu0 0
        %763 = vmatprep.subr.bf16.mxu0 0
        %764 = vmatpush1.bf16.msra.mxu0 0
        %765 = vmatprep.mubr.bf16.mxu0 0
        %766 = vmatmul.mubr.bf16.gmra.mrb[0].mxu0 %v312
        %v767 = vpop.f32.mrb[0].mxu0
        %v768 = vadd.f32 0.0, %v767
        %v769 = vpop.f32.mrb[0].mxu0
        %v770 = vpop.f32.mrb[0].mxu0
        %v771 = vadd.f32 0.0, %v770
        %v772 = vpop.f32.mrb[0].mxu0
        %773 = vmatprep.mubr.bf16.mxu0 0
        %774 = vmatmul.mubr.bf16.gmra.mrb[0].mxu0 %v315
        %v775 = vpop.f32.mrb[0].mxu0
        %v776 = vadd.f32 0.0, %v775
        %v777 = vpop.f32.mrb[0].mxu0
        %v778 = vpop.f32.mrb[0].mxu0
        %v779 = vadd.f32 0.0, %v778
        %v780 = vpop.f32.mrb[0].mxu0
        %781 = vdwg.mxu0
        %v782 = vmax.f32 %v712, %v768
        %v783 = vmax.f32 %v713, %v771
        %v784 = vmax.f32 %v714, %v776
        %v785 = vmax.f32 %v715, %v779
        %s786 = scalar_lea.vmem %s270, 112
        %v787 = vld [vmem:[%s786] sm:$0xf]
        %v788 = vld [vmem:[%s786 + $0x4] sm:$0xf]
        %v789 = vld [vmem:[%s786 + $0x8] sm:$0xf]
        %v790 = vld [vmem:[%s786 + $0xc] sm:$0xf]
        %v795 = vunpack.c.l.b16 %v787
        %v796 = vunpack.c.l.b16 %v788
        %v797 = vunpack.c.l.b16 %v789
        %v798 = vunpack.c.l.b16 %v790
        %v799 = vpack.c.b16 %v796, %v795
        %v800 = vpack.c.b16 %v798, %v797
        %803 = vmatprep.subr.bf16.mxu0 0
        %804 = vmatpush1.bf16.msra.mxu0 %v799
        %805 = vmatprep.subr.bf16.mxu0 0
        %806 = vmatpush1.bf16.msra.mxu0 %v800
        %807 = vmatprep.subr.bf16.mxu0 0
        %808 = vmatpush1.bf16.msra.mxu0 0
        %809 = vmatprep.subr.bf16.mxu0 0
        %810 = vmatpush1.bf16.msra.mxu0 0
        %811 = vmatprep.subr.bf16.mxu0 0
        %812 = vmatpush1.bf16.msra.mxu0 0
        %813 = vmatprep.subr.bf16.mxu0 0
        %814 = vmatpush1.bf16.msra.mxu0 0
        %815 = vmatprep.subr.bf16.mxu0 0
        %816 = vmatpush1.bf16.msra.mxu0 0
        %817 = vmatprep.subr.bf16.mxu0 0
        %818 = vmatpush1.bf16.msra.mxu0 0
        %819 = vmatprep.subr.bf16.mxu0 0
        %820 = vmatpush1.bf16.msra.mxu0 0
        %821 = vmatprep.subr.bf16.mxu0 0
        %822 = vmatpush1.bf16.msra.mxu0 0
        %823 = vmatprep.subr.bf16.mxu0 0
        %824 = vmatpush1.bf16.msra.mxu0 0
        %825 = vmatprep.subr.bf16.mxu0 0
        %826 = vmatpush1.bf16.msra.mxu0 0
        %827 = vmatprep.subr.bf16.mxu0 0
        %828 = vmatpush1.bf16.msra.mxu0 0
        %829 = vmatprep.subr.bf16.mxu0 0
        %830 = vmatpush1.bf16.msra.mxu0 0
        %831 = vmatprep.subr.bf16.mxu0 0
        %832 = vmatpush1.bf16.msra.mxu0 0
        %833 = vmatprep.subr.bf16.mxu0 0
        %834 = vmatpush1.bf16.msra.mxu0 0
        %835 = vmatprep.mubr.bf16.mxu0 0
        %836 = vmatmul.mubr.bf16.gmra.mrb[0].mxu0 %v312
        %v837 = vpop.f32.mrb[0].mxu0
        %v838 = vadd.f32 0.0, %v837
        %v839 = vpop.f32.mrb[0].mxu0
        %v840 = vpop.f32.mrb[0].mxu0
        %v841 = vadd.f32 0.0, %v840
        %v842 = vpop.f32.mrb[0].mxu0
        %843 = vmatprep.mubr.bf16.mxu0 0
        %844 = vmatmul.mubr.bf16.gmra.mrb[0].mxu0 %v315
        %v845 = vpop.f32.mrb[0].mxu0
        %v846 = vadd.f32 0.0, %v845
        %v847 = vpop.f32.mrb[0].mxu0
        %v848 = vpop.f32.mrb[0].mxu0
        %v849 = vadd.f32 0.0, %v848
        %v850 = vpop.f32.mrb[0].mxu0
        %851 = vdwg.mxu0
        %v852 = vmax.f32 %v782, %v838
        %v853 = vmax.f32 %v783, %v841
        %v854 = vmax.f32 %v784, %v846
        %v855 = vmax.f32 %v785, %v849
        %v856 = vld [vmem:[%s3] sm:$0xf]
        %v857 = vld [vmem:[%s3 + $0x4] sm:$0xf]
        %v858 = vld [vmem:[%s3 + $0x8] sm:$0xf]
        %v859 = vld [vmem:[%s3 + $0xc] sm:$0xf]
        %v860 = vld [vmem:[%s278] sm:$0xf]
        %v861 = vld [vmem:[%s278 + $0x4] sm:$0xf]
        %v862 = vld [vmem:[%s278 + $0x8] sm:$0xf]
        %v863 = vld [vmem:[%s278 + $0xc] sm:$0xf]
        %v868 = vunpack.c.l.b16 %v856
        %v869 = vunpack.c.l.b16 %v857
        %v870 = vunpack.c.l.b16 %v858
        %v871 = vunpack.c.l.b16 %v859
        %v872 = vpack.c.b16 %v869, %v868
        %v873 = vpack.c.b16 %v871, %v870
        %v878 = vunpack.c.l.b16 %v860
        %v879 = vunpack.c.l.b16 %v861
        %v880 = vunpack.c.l.b16 %v862
        %v881 = vunpack.c.l.b16 %v863
        %v882 = vpack.c.b16 %v879, %v878
        %v883 = vpack.c.b16 %v881, %v880
        %v887 = vsel %vm310, %v872, 0
        %v890 = vsel %vm310, %v873, 0
        %892 = vmatprep.subr.bf16.mxu0 0
        %893 = vmatpush1.bf16.msra.mxu0 %v882
        %894 = vmatprep.subr.bf16.mxu0 0
        %895 = vmatpush1.bf16.msra.mxu0 %v883
        %896 = vmatprep.subr.bf16.mxu0 0
        %897 = vmatpush1.bf16.msra.mxu0 0
        %898 = vmatprep.subr.bf16.mxu0 0
        %899 = vmatpush1.bf16.msra.mxu0 0
        %900 = vmatprep.subr.bf16.mxu0 0
        %901 = vmatpush1.bf16.msra.mxu0 0
        %902 = vmatprep.subr.bf16.mxu0 0
        %903 = vmatpush1.bf16.msra.mxu0 0
        %904 = vmatprep.subr.bf16.mxu0 0
        %905 = vmatpush1.bf16.msra.mxu0 0
        %906 = vmatprep.subr.bf16.mxu0 0
        %907 = vmatpush1.bf16.msra.mxu0 0
        %908 = vmatprep.subr.bf16.mxu0 0
        %909 = vmatpush1.bf16.msra.mxu0 0
        %910 = vmatprep.subr.bf16.mxu0 0
        %911 = vmatpush1.bf16.msra.mxu0 0
        %912 = vmatprep.subr.bf16.mxu0 0
        %913 = vmatpush1.bf16.msra.mxu0 0
        %914 = vmatprep.subr.bf16.mxu0 0
        %915 = vmatpush1.bf16.msra.mxu0 0
        %916 = vmatprep.subr.bf16.mxu0 0
        %917 = vmatpush1.bf16.msra.mxu0 0
        %918 = vmatprep.subr.bf16.mxu0 0
        %919 = vmatpush1.bf16.msra.mxu0 0
        %920 = vmatprep.subr.bf16.mxu0 0
        %921 = vmatpush1.bf16.msra.mxu0 0
        %922 = vmatprep.subr.bf16.mxu0 0
        %923 = vmatpush1.bf16.msra.mxu0 0
        %924 = vmatprep.mubr.bf16.mxu0 0
        %925 = vmatmul.mubr.bf16.gmra.mrb[0].mxu0 %v887
        %v926 = vpop.f32.mrb[0].mxu0
        %v927 = vadd.f32 0.0, %v926
        %v928 = vpop.f32.mrb[0].mxu0
        %v929 = vpop.f32.mrb[0].mxu0
        %v930 = vadd.f32 0.0, %v929
        %v931 = vpop.f32.mrb[0].mxu0
        %932 = vmatprep.mubr.bf16.mxu0 0
        %933 = vmatmul.mubr.bf16.gmra.mrb[0].mxu0 %v890
        %v934 = vpop.f32.mrb[0].mxu0
        %v935 = vadd.f32 0.0, %v934
        %v936 = vpop.f32.mrb[0].mxu0
        %v937 = vpop.f32.mrb[0].mxu0
        %v938 = vadd.f32 0.0, %v937
        %v939 = vpop.f32.mrb[0].mxu0
        %940 = vdwg.mxu0
        %v941 = vadd.f32 %v852, %v927
        %v942 = vadd.f32 %v853, %v930
        %v943 = vadd.f32 %v854, %v935
        %v944 = vadd.f32 %v855, %v938
        %v945 = vld [vmem:[%s4] sm:$0xff]
        %v946 = vld [vmem:[%s4 + $0x8] sm:$0xff]
        %v947 = vld [vmem:[%s4 + $0x10] sm:$0xff]
        %v948 = vld [vmem:[%s4 + $0x18] sm:$0xff]
        %950 = vset.pattern.permute.xlu0 0
        %951 = vperm.xlu0 %950, %v945
        %v952 = vpop.permute.xlu0 %951
        %955 = vset.pattern.permute.xlu0 0
        %956 = vperm.xlu0 %955, %v946
        %v957 = vpop.permute.xlu0 %956
        %960 = vset.pattern.permute.xlu0 0
        %961 = vperm.xlu0 %960, %v947
        %v962 = vpop.permute.xlu0 %961
        %965 = vset.pattern.permute.xlu0 0
        %966 = vperm.xlu0 %965, %v948
        %v967 = vpop.permute.xlu0 %966
        %v969 = vadd.f32 %v941, %v952
        %v970 = vadd.f32 %v942, %v957
        %v971 = vadd.f32 %v943, %v962
        %v972 = vadd.f32 %v944, %v967
        %vm973 = vcmp.ge.f32.partialorder %v969, 0.0
        %vm974 = vcmp.ge.f32.partialorder %v970, 0.0
        %vm975 = vcmp.ge.f32.partialorder %v971, 0.0
        %vm976 = vcmp.ge.f32.partialorder %v972, 0.0
        %v977 = vmul.f32 %v969, 0.2
        %v978 = vmul.f32 %v970, 0.2
        %v979 = vmul.f32 %v971, 0.2
        %v980 = vmul.f32 %v972, 0.2
        %v981 = vsel %vm973, %v969, %v977
        %v982 = vsel %vm974, %v970, %v978
        %v983 = vsel %vm975, %v971, %v979
        %v984 = vsel %vm976, %v972, %v980
        %vm985 = vcmask 523264
        %986 = vst.msk [vmem:[%s262] sm:$0xff] %vm985, %v981
        %987 = vst.msk [vmem:[%s262 + $0x8] sm:$0xff] %vm985, %v982
        %988 = vst.msk [vmem:[%s262 + $0x10] sm:$0xff] %vm985, %v983
        %989 = vst.msk [vmem:[%s262 + $0x18] sm:$0xff] %vm985, %v984
        %s990 = sand.u32 %s160, 1
        %s991 = scalar_lea.sflag [#allocation3], %s990
        %s992 = sand.u32 %s160, 1
        %s993 = smul.addr %s992, 32
        %s994 = scalar_lea.vmem [#allocation2], %s993
        // Predicated region
        $region41: #{_lambda_.3} parent=39 // pred_check
          %p995 = pneg %p170
        $region42: #{_lambda_.3} parent=39 // pred_check_branch
          %997 = sbr.rel (%p995) target = $region44
        $region43: #{_lambda_.3} parent=39 // pred_region
          %s999 = ssub.s32 512, 512
          %1000 = vsyncadd %s991, %s999
          %s1001 = smul.addr %s23, 4
          %s1002 = sadd.s32 %s24, %s1001
          %s1003 = smul.addr %s1002, 128
          %s1004 = scalar_lea.hbm %s5, %s1003
          %s1005 = sshll.u32 %s994, 4
          %s1006 = int_to_ptr.vmem [resolvable:$true] %s1005
          %1011 = dma.vmem_to_hbm [thread:$0]  %s1006, 512, %s1004, %s991, 128, 128, 8
        $region44: #{_lambda_.3} parent=39 // pred_fallthru
          _
      $region40: #{_lambda_.3} parent=5 // pred_fallthru
        _
      %p1012 = scmp.le.s32.totalorder 2, %s14
      // Predicated region
      $region45: #{_lambda_.3} parent=5 // pred_check
        %p1013 = pneg %p1012
      $region46: #{_lambda_.3} parent=5 // pred_check_branch
        %1015 = sbr.rel (%p1013) target = $region48
      $region47: #{_lambda_.3} parent=5 // pred_region
        %s1016 = ssub.s32 %s14, 2
        // Predicated region
        $region49: #{_lambda_.3} parent=47 // pred_check
          %p1017 = pneg %p176
        $region50: #{_lambda_.3} parent=47 // pred_check_branch
          %1019 = sbr.rel (%p1017) target = $region52
        $region51: #{_lambda_.3} parent=47 // pred_region
          %s1020 = sand.u32 %s161, 1
          %s1021 = scalar_lea.sflag [#allocation3], %s1020
          %s1022 = sand.u32 %s161, 1
          %s1023 = smul.addr %s1022, 32
          %s1024 = scalar_lea.vmem [#allocation2], %s1023
          %1025 = dma.done %s1021, 512
        $region52: #{_lambda_.3} parent=47 // pred_fallthru
          _
      $region48: #{_lambda_.3} parent=5 // pred_fallthru
        _
    $region6: #{_lambda_.3} parent=1 // loop_footer
      %s18 = sadd.s32 1, %s14
    $region7: #{_lambda_.3} parent=1 // loop_footer_branch
      %13 = sbr.rel target = $region3
    $region8: #{_lambda_.3} parent=1 // loop_exit
      _
    %1026 = vsyncpa [#allocation3], 1
    %s1027 = scalar_lea.sflag [#allocation3], 1
    %1028 = vsyncpa %s1027, 1

</llo_original>
